<compile_context>
chip_gen: v7x
topology: tpu7x:2x2x1
jax: 0.10.0
libtpu: 0.0.40
codegen_flags: <defaults>
</compile_context>

<pallas_src>
import functools

import jax
import jax.numpy as jnp
from jax.experimental import pallas as pl
from jax.experimental.pallas import tpu as pltpu


def _round_up(x, m):
    return (x + m - 1) // m * m


def _cdiv(a, b):
    return (a + b - 1) // b


def mclet_kernel(msg_ref, wfc_ref, bfc_ref, attn_ref, wg_ref, bg_ref,
                 wexp_ref, bexp_ref, out_ref, *, deg, num_heads, two_e,
                 num_types, inv_temperature):
    """One (tile_n, deg*2E) tile of destination nodes.  Everything stays 2-D."""
    f32 = jnp.float32
    bf16 = jnp.bfloat16
    n = out_ref.shape[0]
    T = num_types

    x = jnp.maximum(msg_ref[...], 0)              # relu(mailbox), bf16 (n, deg*2E)
    wfc = wfc_ref[...]                            # bf16 (2E, T)
    bfc = bfc_ref[...]                            # f32  (1, T)
    attn = attn_ref[...]                          # bf16 (T, H)

    # Per-neighbour-slot fc + all-head scores.  deg is small & static, so this
    # is an unrolled loop over lane slices — no block-diagonal kron weight and
    # no deg x useless K-reduction over zeros.
    predict = []                                  # (n, T) f32 per slot
    scores = []                                   # (n, H) f32 per slot
    psum = jnp.zeros((n, T), f32)
    for d in range(deg):
        xd = x[:, d * two_e:(d + 1) * two_e]
        pd = jnp.dot(xd, wfc, preferred_element_type=f32) + bfc
        sd = jnp.dot(pd.astype(bf16), attn, preferred_element_type=f32)
        predict.append(pd)
        scores.append(sd * inv_temperature)
        psum = psum + pd

    # MoE gate: softmax over heads of a linear on the deg-mean-pooled
    # predictions (the 1/deg mean is folded into wg on the host).
    glog = jnp.dot(psum.astype(bf16), wg_ref[...], preferred_element_type=f32)
    glog = glog + bg_ref[...]
    gm = jnp.max(glog, axis=-1, keepdims=True)
    ge = jnp.exp(glog - gm)
    gate = ge * pl.reciprocal(jnp.sum(ge, axis=-1, keepdims=True), approx=True)

    # Per-head: numerically-stable (per-head max) softmax over the deg
    # neighbours, attention pooling, expert linear, gate-weighted accumulate.
    # Pure VPU/EUP broadcasts + reductions instead of 0/1 indicator matmuls.
    acc = jnp.zeros((n, T), f32)
    for h in range(num_heads):
        cols = [scores[d][:, h:h + 1] for d in range(deg)]        # (n, 1) each
        m_h = cols[0]
        for d in range(1, deg):
            m_h = jnp.maximum(m_h, cols[d])
        es = [jnp.exp(c - m_h) for c in cols]
        denom = es[0]
        for d in range(1, deg):
            denom = denom + es[d]
        inv = pl.reciprocal(denom, approx=True)                   # (n, 1)
        pooled = (es[0] * inv) * predict[0]
        for d in range(1, deg):
            pooled = pooled + (es[d] * inv) * predict[d]          # (n, T)
        expert = jnp.dot(pooled.astype(bf16), wexp_ref[h],
                         preferred_element_type=f32) + bexp_ref[h:h + 1, :]
        acc = acc + gate[:, h:h + 1] * expert

    out_ref[...] = jax.nn.sigmoid(acc)


def _build_constants(params, *, deg):
    """Host-side precompute of the small resident matrices (bf16 MXU operands)."""
    f32, bf16 = jnp.float32, jnp.bfloat16
    return (
        params["w_fc"].astype(bf16),               # (2E, T)
        params["b_fc"].astype(f32),                # (1, T)
        params["attn"].T.astype(bf16),             # (T, H)
        (params["w_gate"] / deg).astype(bf16),     # (T, H)  mean over deg folded in
        params["b_gate"].astype(f32),              # (1, H)
        params["w_exp"].astype(bf16),              # (H, T, T)
        params["b_exp"].astype(f32),               # (H, T)
    )


def _vmem_estimate(tile_n, ch, num_types, deg, const_bytes):
    """Rough per-step VMEM footprint (bytes), conservative lane-padded bound."""
    lane_t = _round_up(max(num_types, 1), 128)
    msg = 2 * tile_n * ch * 2                      # double-buffered bf16 msg tile
    out = 2 * tile_n * lane_t * 4                  # out blocks
    live = tile_n * lane_t * 4 * (2 * deg + 8)     # f32 intermediates
    return msg + out + live + 2 * const_bytes + (2 << 20)


def mclet_forward(msg, params, *, num_heads, temperature=1.0, tile_n=1024):
    n_dst, deg, two_e = msg.shape
    T = params["w_fc"].shape[1]
    ch = deg * two_e

    # Lane-aligned bf16 mailbox (deg folded into the channel axis).
    msg2d = msg.reshape(n_dst, ch).astype(jnp.bfloat16)

    consts = _build_constants(params, deg=deg)
    const_bytes = sum(int(c.size) * c.dtype.itemsize for c in consts)

    # Generation-aware VMEM budget (v5e/v6e: 128 MiB, v7x: 64 MiB per TC).
    try:
        vmem_cap = int(pltpu.get_tpu_info().vmem_capacity_bytes)
    except Exception:  # pragma: no cover - conservative default
        vmem_cap = 64 * 1024 * 1024
    budget = max(32 * 1024 * 1024, int(0.70 * vmem_cap))

    # Largest bf16-sublane-friendly tile that fits the budget and the problem.
    tile_n = max(16, min(_round_up(tile_n, 16), _round_up(n_dst, 16)))
    while tile_n > 16 and _vmem_estimate(tile_n, ch, T, deg, const_bytes) > budget:
        tile_n = max(16, _round_up(tile_n // 2, 16))

    # Even number of grid steps (>=2) so v7x's two TensorCores stay balanced.
    steps = max(1, _cdiv(n_dst, tile_n))
    if steps % 2 == 1 and n_dst > 16:
        steps += 1
        tile_n = max(16, _round_up(_cdiv(n_dst, steps), 16))
        steps = _cdiv(n_dst, tile_n)
        if steps % 2 == 1:
            steps += 1                              # one extra all-zero tile
    n_pad = steps * tile_n
    if n_pad != n_dst:
        msg2d = jnp.pad(msg2d, ((0, n_pad - n_dst), (0, 0)))

    kernel = functools.partial(
        mclet_kernel, deg=deg, num_heads=num_heads, two_e=two_e,
        num_types=T, inv_temperature=1.0 / temperature)

    def _run(single_buffer_consts):
        const_kw = ({"pipeline_mode": pl.Buffered(1)}
                    if single_buffer_consts else {})
        in_specs = [pl.BlockSpec((tile_n, ch), lambda i: (i, 0))]
        in_specs += [
            pl.BlockSpec(c.shape, (lambda i, nd=c.ndim: (0,) * nd), **const_kw)
            for c in consts
        ]
        out = pl.pallas_call(
            kernel,
            out_shape=jax.ShapeDtypeStruct((n_pad, T), jnp.float32),
            grid=(steps,),
            in_specs=in_specs,
            out_specs=pl.BlockSpec((tile_n, T), lambda i: (i, 0)),
            compiler_params=pltpu.CompilerParams(
                dimension_semantics=("parallel",),
                vmem_limit_bytes=budget),
        )(msg2d, *consts)
        return jax.block_until_ready(out)

    try:
        out = _run(True)    # resident constants single-buffered
    except Exception:       # pragma: no cover - jax without BlockSpec pipeline_mode
        out = _run(False)
    return out[:n_dst]


def mclet_reference(msg, params, *, num_heads, temperature=1.0):
    """Plain-JAX f32 reference of the same computation."""
    m = jnp.maximum(msg, 0.0)
    predict = jnp.einsum("nde,et->ndt", m, params["w_fc"]) + params["b_fc"]
    gate = jax.nn.softmax(jnp.mean(predict, axis=1) @ params["w_gate"]
                          + params["b_gate"], axis=-1)
    out = jnp.zeros((msg.shape[0], params["w_fc"].shape[1]), jnp.float32)
    for h in range(num_heads):
        s = jnp.einsum("ndt,t->nd", predict, params["attn"][h]) / temperature
        w = jax.nn.softmax(s, axis=-1)
        pooled = jnp.einsum("nd,ndt->nt", w, predict)
        out = out + gate[:, h:h + 1] * (pooled @ params["w_exp"][h]
                                        + params["b_exp"][h][None, :])
    return jax.nn.sigmoid(out)


def make_params(key, embedding_dim, num_types, num_heads):
    two_e = 2 * embedding_dim
    ks = jax.random.split(key, 8)
    return {
        "w_fc":   0.1 * jax.random.normal(ks[0], (two_e, num_types), jnp.float32),
        "b_fc":   0.1 * jax.random.normal(ks[1], (1, num_types), jnp.float32),
        "attn":   0.1 * jax.random.normal(ks[2], (num_heads, num_types), jnp.float32),
        "w_exp":  0.1 * jax.random.normal(ks[3], (num_heads, num_types, num_types), jnp.float32),
        "b_exp":  0.1 * jax.random.normal(ks[4], (num_heads, num_types), jnp.float32),
        "w_gate": 0.1 * jax.random.normal(ks[5], (num_types, num_heads), jnp.float32),
        "b_gate": 0.1 * jax.random.normal(ks[6], (1, num_heads), jnp.float32),
    }


if __name__ == "__main__":
    # Small, forward-consistent shapes (deg * 2E = 128 -> lane-dense mailbox rows).
    num_nodes = 32          # source nodes
    num_dst = 24            # destination nodes
    deg = 4                 # fixed in-degree (mailbox width)
    embedding_dim = 16      # msg channels = 2 * embedding_dim = 32
    num_types = 8
    num_heads = 2

    key = jax.random.PRNGKey(0)
    k_src, k_edge, k_idx, k_par = jax.random.split(key, 4)

    # Synthetic graph: every dst node receives `deg` edges from random src nodes.
    src_embedding = jax.random.normal(k_src, (num_nodes, 2 * embedding_dim), jnp.float32)
    edge_embedding = jax.random.normal(k_edge, (num_dst * deg, 2 * embedding_dim), jnp.float32)
    src_ids = jax.random.randint(k_idx, (num_dst, deg), 0, num_nodes)

    # Glue: DGL's update_all(fn.u_add_e('h','h','msg')) -> dense mailbox tensor.
    msg = src_embedding[src_ids] + edge_embedding.reshape(num_dst, deg, 2 * embedding_dim)

    params = make_params(k_par, embedding_dim, num_types, num_heads)

    out = mclet_forward(msg, params, num_heads=num_heads, temperature=1.0)
    out = jax.block_until_ready(out)

    ref = mclet_reference(msg, params, num_heads=num_heads, temperature=1.0)
    assert out.shape == (num_dst, num_types)
    # bf16 MXU operands + approx reciprocals -> modest tolerance vs f32 reference.
    assert jnp.allclose(out, ref, atol=2e-2, rtol=2e-2), float(jnp.max(jnp.abs(out - ref)))

    print("KERNEL_OK")
</pallas_src>

<mosaic_0001>
module attributes {stable_mosaic.version = 11 : i64} {
  func.func @mclet_kernel(%arg0: i32, %arg1: memref<16x128xbf16, #tpu.memory_space<vmem>>, %arg2: memref<32x8xbf16, #tpu.memory_space<vmem>>, %arg3: memref<1x8xf32, #tpu.memory_space<vmem>>, %arg4: memref<8x2xbf16, #tpu.memory_space<vmem>>, %arg5: memref<8x2xbf16, #tpu.memory_space<vmem>>, %arg6: memref<1x2xf32, #tpu.memory_space<vmem>>, %arg7: memref<2x8x8xbf16, #tpu.memory_space<vmem>>, %arg8: memref<2x8xf32, #tpu.memory_space<vmem>>, %arg9: memref<16x8xf32, #tpu.memory_space<vmem>>) attributes {dimension_semantics = [#tpu.dimension_semantics<parallel>], iteration_bounds = array<i64: 2>, scalar_prefetch = 0 : i64, scratch_operands = 0 : i64, tpu.core_type = #tpu.core_type<tc>, window_params = [{transform_indices = @transform_0, window_bounds = array<i64: 16, 128>}, {pipeline_mode = #tpu.pipeline_mode<synchronous>, transform_indices = @transform_1, window_bounds = array<i64: 32, 8>}, {pipeline_mode = #tpu.pipeline_mode<synchronous>, transform_indices = @transform_2, window_bounds = array<i64: 1, 8>}, {pipeline_mode = #tpu.pipeline_mode<synchronous>, transform_indices = @transform_3, window_bounds = array<i64: 8, 2>}, {pipeline_mode = #tpu.pipeline_mode<synchronous>, transform_indices = @transform_4, window_bounds = array<i64: 8, 2>}, {pipeline_mode = #tpu.pipeline_mode<synchronous>, transform_indices = @transform_5, window_bounds = array<i64: 1, 2>}, {pipeline_mode = #tpu.pipeline_mode<synchronous>, transform_indices = @transform_6, window_bounds = array<i64: 2, 8, 8>}, {pipeline_mode = #tpu.pipeline_mode<synchronous>, transform_indices = @transform_7, window_bounds = array<i64: 2, 8>}, {transform_indices = @transform_8, window_bounds = array<i64: 16, 8>}]} {
    %c0 = arith.constant 0 : index
    %c0_0 = arith.constant 0 : index
    %0 = vector.load %arg1[%c0, %c0_0] : memref<16x128xbf16, #tpu.memory_space<vmem>>, vector<16x128xbf16>
    %cst = arith.constant 0.000000e+00 : bf16
    %1 = vector.broadcast %cst : bf16 to vector<16x128xbf16>
    %2 = arith.maximumf %0, %1 : vector<16x128xbf16>
    %c0_1 = arith.constant 0 : index
    %c0_2 = arith.constant 0 : index
    %3 = vector.load %arg2[%c0_1, %c0_2] : memref<32x8xbf16, #tpu.memory_space<vmem>>, vector<32x8xbf16>
    %c0_3 = arith.constant 0 : index
    %c0_4 = arith.constant 0 : index
    %4 = vector.load %arg3[%c0_3, %c0_4] : memref<1x8xf32, #tpu.memory_space<vmem>>, vector<1x8xf32>
    %c0_5 = arith.constant 0 : index
    %c0_6 = arith.constant 0 : index
    %5 = vector.load %arg4[%c0_5, %c0_6] : memref<8x2xbf16, #tpu.memory_space<vmem>>, vector<8x2xbf16>
    %cst_7 = arith.constant 0.000000e+00 : f32
    %6 = vector.broadcast %cst_7 : f32 to vector<16x8xf32>
    %7 = vector.extract_strided_slice %2 {offsets = [0, 0], sizes = [16, 32], strides = [1, 1]} : vector<16x128xbf16> to vector<16x32xbf16>
    %cst_8 = arith.constant dense<0.000000e+00> : vector<16x8xf32>
    %8 = tpu.matmul %7, %3, %cst_8 {dimension_numbers = #tpu.dot_dimension_numbers<[1], [0], [0], [1], [0, 0, 1, 1], [], []>} : vector<16x32xbf16>, vector<32x8xbf16>, vector<16x8xf32> -> vector<16x8xf32>
    %9 = vector.broadcast %4 : vector<1x8xf32> to vector<16x8xf32>
    %10 = arith.addf %8, %9 : vector<16x8xf32>
    %11 = arith.truncf %10 : vector<16x8xf32> to vector<16x8xbf16>
    %cst_9 = arith.constant dense<0.000000e+00> : vector<16x2xf32>
    %12 = tpu.matmul %11, %5, %cst_9 {dimension_numbers = #tpu.dot_dimension_numbers<[1], [0], [0], [1], [0, 0, 1, 1], [], []>} : vector<16x8xbf16>, vector<8x2xbf16>, vector<16x2xf32> -> vector<16x2xf32>
    %cst_10 = arith.constant 1.000000e+00 : f32
    %13 = vector.broadcast %cst_10 : f32 to vector<16x2xf32>
    %14 = arith.mulf %12, %13 : vector<16x2xf32>
    %15 = arith.addf %6, %10 : vector<16x8xf32>
    %16 = vector.extract_strided_slice %2 {offsets = [0, 32], sizes = [16, 32], strides = [1, 1]} : vector<16x128xbf16> to vector<16x32xbf16>
    %cst_11 = arith.constant dense<0.000000e+00> : vector<16x8xf32>
    %17 = tpu.matmul %16, %3, %cst_11 {dimension_numbers = #tpu.dot_dimension_numbers<[1], [0], [0], [1], [0, 0, 1, 1], [], []>} : vector<16x32xbf16>, vector<32x8xbf16>, vector<16x8xf32> -> vector<16x8xf32>
    %18 = vector.broadcast %4 : vector<1x8xf32> to vector<16x8xf32>
    %19 = arith.addf %17, %18 : vector<16x8xf32>
    %20 = arith.truncf %19 : vector<16x8xf32> to vector<16x8xbf16>
    %cst_12 = arith.constant dense<0.000000e+00> : vector<16x2xf32>
    %21 = tpu.matmul %20, %5, %cst_12 {dimension_numbers = #tpu.dot_dimension_numbers<[1], [0], [0], [1], [0, 0, 1, 1], [], []>} : vector<16x8xbf16>, vector<8x2xbf16>, vector<16x2xf32> -> vector<16x2xf32>
    %cst_13 = arith.constant 1.000000e+00 : f32
    %22 = vector.broadcast %cst_13 : f32 to vector<16x2xf32>
    %23 = arith.mulf %21, %22 : vector<16x2xf32>
    %24 = arith.addf %15, %19 : vector<16x8xf32>
    %25 = vector.extract_strided_slice %2 {offsets = [0, 64], sizes = [16, 32], strides = [1, 1]} : vector<16x128xbf16> to vector<16x32xbf16>
    %cst_14 = arith.constant dense<0.000000e+00> : vector<16x8xf32>
    %26 = tpu.matmul %25, %3, %cst_14 {dimension_numbers = #tpu.dot_dimension_numbers<[1], [0], [0], [1], [0, 0, 1, 1], [], []>} : vector<16x32xbf16>, vector<32x8xbf16>, vector<16x8xf32> -> vector<16x8xf32>
    %27 = vector.broadcast %4 : vector<1x8xf32> to vector<16x8xf32>
    %28 = arith.addf %26, %27 : vector<16x8xf32>
    %29 = arith.truncf %28 : vector<16x8xf32> to vector<16x8xbf16>
    %cst_15 = arith.constant dense<0.000000e+00> : vector<16x2xf32>
    %30 = tpu.matmul %29, %5, %cst_15 {dimension_numbers = #tpu.dot_dimension_numbers<[1], [0], [0], [1], [0, 0, 1, 1], [], []>} : vector<16x8xbf16>, vector<8x2xbf16>, vector<16x2xf32> -> vector<16x2xf32>
    %cst_16 = arith.constant 1.000000e+00 : f32
    %31 = vector.broadcast %cst_16 : f32 to vector<16x2xf32>
    %32 = arith.mulf %30, %31 : vector<16x2xf32>
    %33 = arith.addf %24, %28 : vector<16x8xf32>
    %34 = vector.extract_strided_slice %2 {offsets = [0, 96], sizes = [16, 32], strides = [1, 1]} : vector<16x128xbf16> to vector<16x32xbf16>
    %cst_17 = arith.constant dense<0.000000e+00> : vector<16x8xf32>
    %35 = tpu.matmul %34, %3, %cst_17 {dimension_numbers = #tpu.dot_dimension_numbers<[1], [0], [0], [1], [0, 0, 1, 1], [], []>} : vector<16x32xbf16>, vector<32x8xbf16>, vector<16x8xf32> -> vector<16x8xf32>
    %36 = vector.broadcast %4 : vector<1x8xf32> to vector<16x8xf32>
    %37 = arith.addf %35, %36 : vector<16x8xf32>
    %38 = arith.truncf %37 : vector<16x8xf32> to vector<16x8xbf16>
    %cst_18 = arith.constant dense<0.000000e+00> : vector<16x2xf32>
    %39 = tpu.matmul %38, %5, %cst_18 {dimension_numbers = #tpu.dot_dimension_numbers<[1], [0], [0], [1], [0, 0, 1, 1], [], []>} : vector<16x8xbf16>, vector<8x2xbf16>, vector<16x2xf32> -> vector<16x2xf32>
    %cst_19 = arith.constant 1.000000e+00 : f32
    %40 = vector.broadcast %cst_19 : f32 to vector<16x2xf32>
    %41 = arith.mulf %39, %40 : vector<16x2xf32>
    %42 = arith.addf %33, %37 : vector<16x8xf32>
    %43 = arith.truncf %42 : vector<16x8xf32> to vector<16x8xbf16>
    %c0_20 = arith.constant 0 : index
    %c0_21 = arith.constant 0 : index
    %44 = vector.load %arg5[%c0_20, %c0_21] : memref<8x2xbf16, #tpu.memory_space<vmem>>, vector<8x2xbf16>
    %cst_22 = arith.constant dense<0.000000e+00> : vector<16x2xf32>
    %45 = tpu.matmul %43, %44, %cst_22 {dimension_numbers = #tpu.dot_dimension_numbers<[1], [0], [0], [1], [0, 0, 1, 1], [], []>} : vector<16x8xbf16>, vector<8x2xbf16>, vector<16x2xf32> -> vector<16x2xf32>
    %c0_23 = arith.constant 0 : index
    %c0_24 = arith.constant 0 : index
    %46 = vector.load %arg6[%c0_23, %c0_24] : memref<1x2xf32, #tpu.memory_space<vmem>>, vector<1x2xf32>
    %47 = vector.broadcast %46 : vector<1x2xf32> to vector<16x2xf32>
    %48 = arith.addf %45, %47 : vector<16x2xf32>
    %cst_25 = arith.constant dense<0xFF800000> : vector<16xf32>
    %49 = vector.multi_reduction <maximumf>, %48, %cst_25 [1] : vector<16x2xf32> to vector<16xf32>
    %50 = vector.shape_cast %49 : vector<16xf32> to vector<16x1xf32>
    %51 = vector.broadcast %50 : vector<16x1xf32> to vector<16x2xf32>
    %52 = arith.subf %48, %51 : vector<16x2xf32>
    %53 = math.exp %52 : vector<16x2xf32>
    %cst_26 = arith.constant dense<0.000000e+00> : vector<16xf32>
    %54 = vector.multi_reduction <add>, %53, %cst_26 [1] : vector<16x2xf32> to vector<16xf32>
    %55 = vector.shape_cast %54 : vector<16xf32> to vector<16x1xf32>
    %56 = tpu.reciprocal %55 {approx = true} : vector<16x1xf32> -> vector<16x1xf32>
    %57 = vector.broadcast %56 : vector<16x1xf32> to vector<16x2xf32>
    %58 = arith.mulf %53, %57 : vector<16x2xf32>
    %cst_27 = arith.constant 0.000000e+00 : f32
    %59 = vector.broadcast %cst_27 : f32 to vector<16x8xf32>
    %60 = vector.extract_strided_slice %14 {offsets = [0, 0], sizes = [16, 1], strides = [1, 1]} : vector<16x2xf32> to vector<16x1xf32>
    %61 = vector.extract_strided_slice %23 {offsets = [0, 0], sizes = [16, 1], strides = [1, 1]} : vector<16x2xf32> to vector<16x1xf32>
    %62 = vector.extract_strided_slice %32 {offsets = [0, 0], sizes = [16, 1], strides = [1, 1]} : vector<16x2xf32> to vector<16x1xf32>
    %63 = vector.extract_strided_slice %41 {offsets = [0, 0], sizes = [16, 1], strides = [1, 1]} : vector<16x2xf32> to vector<16x1xf32>
    %64 = arith.maximumf %60, %61 : vector<16x1xf32>
    %65 = arith.maximumf %64, %62 : vector<16x1xf32>
    %66 = arith.maximumf %65, %63 : vector<16x1xf32>
    %67 = arith.subf %60, %66 : vector<16x1xf32>
    %68 = math.exp %67 : vector<16x1xf32>
    %69 = arith.subf %61, %66 : vector<16x1xf32>
    %70 = math.exp %69 : vector<16x1xf32>
    %71 = arith.subf %62, %66 : vector<16x1xf32>
    %72 = math.exp %71 : vector<16x1xf32>
    %73 = arith.subf %63, %66 : vector<16x1xf32>
    %74 = math.exp %73 : vector<16x1xf32>
    %75 = arith.addf %68, %70 : vector<16x1xf32>
    %76 = arith.addf %75, %72 : vector<16x1xf32>
    %77 = arith.addf %76, %74 : vector<16x1xf32>
    %78 = tpu.reciprocal %77 {approx = true} : vector<16x1xf32> -> vector<16x1xf32>
    %79 = arith.mulf %68, %78 : vector<16x1xf32>
    %80 = vector.broadcast %79 : vector<16x1xf32> to vector<16x8xf32>
    %81 = arith.mulf %80, %10 : vector<16x8xf32>
    %82 = arith.mulf %70, %78 : vector<16x1xf32>
    %83 = vector.broadcast %82 : vector<16x1xf32> to vector<16x8xf32>
    %84 = arith.mulf %83, %19 : vector<16x8xf32>
    %85 = arith.addf %81, %84 : vector<16x8xf32>
    %86 = arith.mulf %72, %78 : vector<16x1xf32>
    %87 = vector.broadcast %86 : vector<16x1xf32> to vector<16x8xf32>
    %88 = arith.mulf %87, %28 : vector<16x8xf32>
    %89 = arith.addf %85, %88 : vector<16x8xf32>
    %90 = arith.mulf %74, %78 : vector<16x1xf32>
    %91 = vector.broadcast %90 : vector<16x1xf32> to vector<16x8xf32>
    %92 = arith.mulf %91, %37 : vector<16x8xf32>
    %93 = arith.addf %89, %92 : vector<16x8xf32>
    %94 = arith.truncf %93 : vector<16x8xf32> to vector<16x8xbf16>
    %c0_28 = arith.constant 0 : index
    %c0_29 = arith.constant 0 : index
    %c0_30 = arith.constant 0 : index
    %95 = vector.load %arg7[%c0_28, %c0_29, %c0_30] : memref<2x8x8xbf16, #tpu.memory_space<vmem>>, vector<1x8x8xbf16>
    %96 = vector.shape_cast %95 : vector<1x8x8xbf16> to vector<8x8xbf16>
    %cst_31 = arith.constant dense<0.000000e+00> : vector<16x8xf32>
    %97 = tpu.matmul %94, %96, %cst_31 {dimension_numbers = #tpu.dot_dimension_numbers<[1], [0], [0], [1], [0, 0, 1, 1], [], []>} : vector<16x8xbf16>, vector<8x8xbf16>, vector<16x8xf32> -> vector<16x8xf32>
    %c0_32 = arith.constant 0 : index
    %c0_33 = arith.constant 0 : index
    %98 = vector.load %arg8[%c0_32, %c0_33] : memref<2x8xf32, #tpu.memory_space<vmem>>, vector<1x8xf32>
    %99 = vector.broadcast %98 : vector<1x8xf32> to vector<16x8xf32>
    %100 = arith.addf %97, %99 : vector<16x8xf32>
    %101 = vector.extract_strided_slice %58 {offsets = [0, 0], sizes = [16, 1], strides = [1, 1]} : vector<16x2xf32> to vector<16x1xf32>
    %102 = vector.broadcast %101 : vector<16x1xf32> to vector<16x8xf32>
    %103 = arith.mulf %102, %100 : vector<16x8xf32>
    %104 = arith.addf %59, %103 : vector<16x8xf32>
    %105 = vector.extract_strided_slice %14 {offsets = [0, 1], sizes = [16, 1], strides = [1, 1]} : vector<16x2xf32> to vector<16x1xf32>
    %106 = vector.extract_strided_slice %23 {offsets = [0, 1], sizes = [16, 1], strides = [1, 1]} : vector<16x2xf32> to vector<16x1xf32>
    %107 = vector.extract_strided_slice %32 {offsets = [0, 1], sizes = [16, 1], strides = [1, 1]} : vector<16x2xf32> to vector<16x1xf32>
    %108 = vector.extract_strided_slice %41 {offsets = [0, 1], sizes = [16, 1], strides = [1, 1]} : vector<16x2xf32> to vector<16x1xf32>
    %109 = arith.maximumf %105, %106 : vector<16x1xf32>
    %110 = arith.maximumf %109, %107 : vector<16x1xf32>
    %111 = arith.maximumf %110, %108 : vector<16x1xf32>
    %112 = arith.subf %105, %111 : vector<16x1xf32>
    %113 = math.exp %112 : vector<16x1xf32>
    %114 = arith.subf %106, %111 : vector<16x1xf32>
    %115 = math.exp %114 : vector<16x1xf32>
    %116 = arith.subf %107, %111 : vector<16x1xf32>
    %117 = math.exp %116 : vector<16x1xf32>
    %118 = arith.subf %108, %111 : vector<16x1xf32>
    %119 = math.exp %118 : vector<16x1xf32>
    %120 = arith.addf %113, %115 : vector<16x1xf32>
    %121 = arith.addf %120, %117 : vector<16x1xf32>
    %122 = arith.addf %121, %119 : vector<16x1xf32>
    %123 = tpu.reciprocal %122 {approx = true} : vector<16x1xf32> -> vector<16x1xf32>
    %124 = arith.mulf %113, %123 : vector<16x1xf32>
    %125 = vector.broadcast %124 : vector<16x1xf32> to vector<16x8xf32>
    %126 = arith.mulf %125, %10 : vector<16x8xf32>
    %127 = arith.mulf %115, %123 : vector<16x1xf32>
    %128 = vector.broadcast %127 : vector<16x1xf32> to vector<16x8xf32>
    %129 = arith.mulf %128, %19 : vector<16x8xf32>
    %130 = arith.addf %126, %129 : vector<16x8xf32>
    %131 = arith.mulf %117, %123 : vector<16x1xf32>
    %132 = vector.broadcast %131 : vector<16x1xf32> to vector<16x8xf32>
    %133 = arith.mulf %132, %28 : vector<16x8xf32>
    %134 = arith.addf %130, %133 : vector<16x8xf32>
    %135 = arith.mulf %119, %123 : vector<16x1xf32>
    %136 = vector.broadcast %135 : vector<16x1xf32> to vector<16x8xf32>
    %137 = arith.mulf %136, %37 : vector<16x8xf32>
    %138 = arith.addf %134, %137 : vector<16x8xf32>
    %139 = arith.truncf %138 : vector<16x8xf32> to vector<16x8xbf16>
    %c1 = arith.constant 1 : index
    %c0_34 = arith.constant 0 : index
    %c0_35 = arith.constant 0 : index
    %140 = vector.load %arg7[%c1, %c0_34, %c0_35] : memref<2x8x8xbf16, #tpu.memory_space<vmem>>, vector<1x8x8xbf16>
    %141 = vector.shape_cast %140 : vector<1x8x8xbf16> to vector<8x8xbf16>
    %cst_36 = arith.constant dense<0.000000e+00> : vector<16x8xf32>
    %142 = tpu.matmul %139, %141, %cst_36 {dimension_numbers = #tpu.dot_dimension_numbers<[1], [0], [0], [1], [0, 0, 1, 1], [], []>} : vector<16x8xbf16>, vector<8x8xbf16>, vector<16x8xf32> -> vector<16x8xf32>
    %c1_37 = arith.constant 1 : index
    %c0_38 = arith.constant 0 : index
    %143 = vector.load %arg8[%c1_37, %c0_38] : memref<2x8xf32, #tpu.memory_space<vmem>>, vector<1x8xf32>
    %144 = vector.broadcast %143 : vector<1x8xf32> to vector<16x8xf32>
    %145 = arith.addf %142, %144 : vector<16x8xf32>
    %146 = vector.extract_strided_slice %58 {offsets = [0, 1], sizes = [16, 1], strides = [1, 1]} : vector<16x2xf32> to vector<16x1xf32>
    %147 = vector.broadcast %146 : vector<16x1xf32> to vector<16x8xf32>
    %148 = arith.mulf %147, %145 : vector<16x8xf32>
    %149 = arith.addf %104, %148 : vector<16x8xf32>
    %150 = arith.negf %149 : vector<16x8xf32>
    %151 = math.exp %150 : vector<16x8xf32>
    %cst_39 = arith.constant 1.000000e+00 : f32
    %152 = vector.broadcast %cst_39 : f32 to vector<16x8xf32>
    %153 = arith.addf %152, %151 : vector<16x8xf32>
    %154 = arith.divf %152, %153 : vector<16x8xf32>
    %c0_40 = arith.constant 0 : index
    %c0_41 = arith.constant 0 : index
    %155 = vector.load %arg9[%c0_40, %c0_41] : memref<16x8xf32, #tpu.memory_space<vmem>>, vector<16x8xf32>
    tpu.vector_store %arg9[%c0_40, %c0_41], %154 {strides = array<i32>} : memref<16x8xf32, #tpu.memory_space<vmem>>, vector<16x8xf32>,
    return
  }
  func.func @transform_0(%arg0: i32) -> (i32, i32) {
    %c0_i32 = arith.constant 0 : i32
    %c0_i32_0 = arith.constant 0 : i32
    return %arg0, %c0_i32 : i32, i32
  }
  func.func @transform_1(%arg0: i32) -> (i32, i32) {
    %c0_i32 = arith.constant 0 : i32
    %c0_i32_0 = arith.constant 0 : i32
    %c0_i32_1 = arith.constant 0 : i32
    return %c0_i32, %c0_i32_0 : i32, i32
  }
  func.func @transform_2(%arg0: i32) -> (i32, i32) {
    %c0_i32 = arith.constant 0 : i32
    %c0_i32_0 = arith.constant 0 : i32
    %c0_i32_1 = arith.constant 0 : i32
    return %c0_i32, %c0_i32_0 : i32, i32
  }
  func.func @transform_3(%arg0: i32) -> (i32, i32) {
    %c0_i32 = arith.constant 0 : i32
    %c0_i32_0 = arith.constant 0 : i32
    %c0_i32_1 = arith.constant 0 : i32
    return %c0_i32, %c0_i32_0 : i32, i32
  }
  func.func @transform_4(%arg0: i32) -> (i32, i32) {
    %c0_i32 = arith.constant 0 : i32
    %c0_i32_0 = arith.constant 0 : i32
    %c0_i32_1 = arith.constant 0 : i32
    return %c0_i32, %c0_i32_0 : i32, i32
  }
  func.func @transform_5(%arg0: i32) -> (i32, i32) {
    %c0_i32 = arith.constant 0 : i32
    %c0_i32_0 = arith.constant 0 : i32
    %c0_i32_1 = arith.constant 0 : i32
    return %c0_i32, %c0_i32_0 : i32, i32
  }
  func.func @transform_6(%arg0: i32) -> (i32, i32, i32) {
    %c0_i32 = arith.constant 0 : i32
    %c0_i32_0 = arith.constant 0 : i32
    %c0_i32_1 = arith.constant 0 : i32
    %c0_i32_2 = arith.constant 0 : i32
    return %c0_i32, %c0_i32_0, %c0_i32_1 : i32, i32, i32
  }
  func.func @transform_7(%arg0: i32) -> (i32, i32) {
    %c0_i32 = arith.constant 0 : i32
    %c0_i32_0 = arith.constant 0 : i32
    %c0_i32_1 = arith.constant 0 : i32
    return %c0_i32, %c0_i32_0 : i32, i32
  }
  func.func @transform_8(%arg0: i32) -> (i32, i32) {
    %c0_i32 = arith.constant 0 : i32
    %c0_i32_0 = arith.constant 0 : i32
    return %arg0, %c0_i32 : i32, i32
  }
}

module attributes {stable_mosaic.version = 11 : i64} {
  func.func @mclet_kernel(%arg0: i32, %arg1: memref<16x128xbf16, #tpu.memory_space<vmem>>, %arg2: memref<32x8xbf16, #tpu.memory_space<vmem>>, %arg3: memref<1x8xf32, #tpu.memory_space<vmem>>, %arg4: memref<8x2xbf16, #tpu.memory_space<vmem>>, %arg5: memref<8x2xbf16, #tpu.memory_space<vmem>>, %arg6: memref<1x2xf32, #tpu.memory_space<vmem>>, %arg7: memref<2x8x8xbf16, #tpu.memory_space<vmem>>, %arg8: memref<2x8xf32, #tpu.memory_space<vmem>>, %arg9: memref<16x8xf32, #tpu.memory_space<vmem>>) attributes {dimension_semantics = [#tpu.dimension_semantics<parallel>], iteration_bounds = array<i64: 2>, scalar_prefetch = 0 : i64, scratch_operands = 0 : i64, tpu.core_type = #tpu.core_type<tc>, window_params = [{transform_indices = @transform_0, window_bounds = array<i64: 16, 128>}, {pipeline_mode = #tpu.pipeline_mode<synchronous>, transform_indices = @transform_1, window_bounds = array<i64: 32, 8>}, {pipeline_mode = #tpu.pipeline_mode<synchronous>, transform_indices = @transform_2, window_bounds = array<i64: 1, 8>}, {pipeline_mode = #tpu.pipeline_mode<synchronous>, transform_indices = @transform_3, window_bounds = array<i64: 8, 2>}, {pipeline_mode = #tpu.pipeline_mode<synchronous>, transform_indices = @transform_4, window_bounds = array<i64: 8, 2>}, {pipeline_mode = #tpu.pipeline_mode<synchronous>, transform_indices = @transform_5, window_bounds = array<i64: 1, 2>}, {pipeline_mode = #tpu.pipeline_mode<synchronous>, transform_indices = @transform_6, window_bounds = array<i64: 2, 8, 8>}, {pipeline_mode = #tpu.pipeline_mode<synchronous>, transform_indices = @transform_7, window_bounds = array<i64: 2, 8>}, {transform_indices = @transform_8, window_bounds = array<i64: 16, 8>}]} {
    %c0 = arith.constant 0 : index
    %c0_0 = arith.constant 0 : index
    %0 = vector.load %arg1[%c0, %c0_0] : memref<16x128xbf16, #tpu.memory_space<vmem>>, vector<16x128xbf16>
    %cst = arith.constant 0.000000e+00 : bf16
    %1 = vector.broadcast %cst : bf16 to vector<16x128xbf16>
    %2 = arith.maximumf %0, %1 : vector<16x128xbf16>
    %c0_1 = arith.constant 0 : index
    %c0_2 = arith.constant 0 : index
    %3 = vector.load %arg2[%c0_1, %c0_2] : memref<32x8xbf16, #tpu.memory_space<vmem>>, vector<32x8xbf16>
    %c0_3 = arith.constant 0 : index
    %c0_4 = arith.constant 0 : index
    %4 = vector.load %arg3[%c0_3, %c0_4] : memref<1x8xf32, #tpu.memory_space<vmem>>, vector<1x8xf32>
    %c0_5 = arith.constant 0 : index
    %c0_6 = arith.constant 0 : index
    %5 = vector.load %arg4[%c0_5, %c0_6] : memref<8x2xbf16, #tpu.memory_space<vmem>>, vector<8x2xbf16>
    %cst_7 = arith.constant 0.000000e+00 : f32
    %6 = vector.broadcast %cst_7 : f32 to vector<16x8xf32>
    %7 = vector.extract_strided_slice %2 {offsets = [0, 0], sizes = [16, 32], strides = [1, 1]} : vector<16x128xbf16> to vector<16x32xbf16>
    %cst_8 = arith.constant dense<0.000000e+00> : vector<16x8xf32>
    %8 = tpu.matmul %7, %3, %cst_8 {dimension_numbers = #tpu.dot_dimension_numbers<[1], [0], [0], [1], [0, 0, 1, 1], [], []>} : vector<16x32xbf16>, vector<32x8xbf16>, vector<16x8xf32> -> vector<16x8xf32>
    %9 = vector.broadcast %4 : vector<1x8xf32> to vector<16x8xf32>
    %10 = arith.addf %8, %9 : vector<16x8xf32>
    %11 = arith.truncf %10 : vector<16x8xf32> to vector<16x8xbf16>
    %cst_9 = arith.constant dense<0.000000e+00> : vector<16x2xf32>
    %12 = tpu.matmul %11, %5, %cst_9 {dimension_numbers = #tpu.dot_dimension_numbers<[1], [0], [0], [1], [0, 0, 1, 1], [], []>} : vector<16x8xbf16>, vector<8x2xbf16>, vector<16x2xf32> -> vector<16x2xf32>
    %cst_10 = arith.constant 1.000000e+00 : f32
    %13 = vector.broadcast %cst_10 : f32 to vector<16x2xf32>
    %14 = arith.mulf %12, %13 : vector<16x2xf32>
    %15 = arith.addf %6, %10 : vector<16x8xf32>
    %16 = vector.extract_strided_slice %2 {offsets = [0, 32], sizes = [16, 32], strides = [1, 1]} : vector<16x128xbf16> to vector<16x32xbf16>
    %cst_11 = arith.constant dense<0.000000e+00> : vector<16x8xf32>
    %17 = tpu.matmul %16, %3, %cst_11 {dimension_numbers = #tpu.dot_dimension_numbers<[1], [0], [0], [1], [0, 0, 1, 1], [], []>} : vector<16x32xbf16>, vector<32x8xbf16>, vector<16x8xf32> -> vector<16x8xf32>
    %18 = vector.broadcast %4 : vector<1x8xf32> to vector<16x8xf32>
    %19 = arith.addf %17, %18 : vector<16x8xf32>
    %20 = arith.truncf %19 : vector<16x8xf32> to vector<16x8xbf16>
    %cst_12 = arith.constant dense<0.000000e+00> : vector<16x2xf32>
    %21 = tpu.matmul %20, %5, %cst_12 {dimension_numbers = #tpu.dot_dimension_numbers<[1], [0], [0], [1], [0, 0, 1, 1], [], []>} : vector<16x8xbf16>, vector<8x2xbf16>, vector<16x2xf32> -> vector<16x2xf32>
    %cst_13 = arith.constant 1.000000e+00 : f32
    %22 = vector.broadcast %cst_13 : f32 to vector<16x2xf32>
    %23 = arith.mulf %21, %22 : vector<16x2xf32>
    %24 = arith.addf %15, %19 : vector<16x8xf32>
    %25 = vector.extract_strided_slice %2 {offsets = [0, 64], sizes = [16, 32], strides = [1, 1]} : vector<16x128xbf16> to vector<16x32xbf16>
    %cst_14 = arith.constant dense<0.000000e+00> : vector<16x8xf32>
    %26 = tpu.matmul %25, %3, %cst_14 {dimension_numbers = #tpu.dot_dimension_numbers<[1], [0], [0], [1], [0, 0, 1, 1], [], []>} : vector<16x32xbf16>, vector<32x8xbf16>, vector<16x8xf32> -> vector<16x8xf32>
    %27 = vector.broadcast %4 : vector<1x8xf32> to vector<16x8xf32>
    %28 = arith.addf %26, %27 : vector<16x8xf32>
    %29 = arith.truncf %28 : vector<16x8xf32> to vector<16x8xbf16>
    %cst_15 = arith.constant dense<0.000000e+00> : vector<16x2xf32>
    %30 = tpu.matmul %29, %5, %cst_15 {dimension_numbers = #tpu.dot_dimension_numbers<[1], [0], [0], [1], [0, 0, 1, 1], [], []>} : vector<16x8xbf16>, vector<8x2xbf16>, vector<16x2xf32> -> vector<16x2xf32>
    %cst_16 = arith.constant 1.000000e+00 : f32
    %31 = vector.broadcast %cst_16 : f32 to vector<16x2xf32>
    %32 = arith.mulf %30, %31 : vector<16x2xf32>
    %33 = arith.addf %24, %28 : vector<16x8xf32>
    %34 = vector.extract_strided_slice %2 {offsets = [0, 96], sizes = [16, 32], strides = [1, 1]} : vector<16x128xbf16> to vector<16x32xbf16>
    %cst_17 = arith.constant dense<0.000000e+00> : vector<16x8xf32>
    %35 = tpu.matmul %34, %3, %cst_17 {dimension_numbers = #tpu.dot_dimension_numbers<[1], [0], [0], [1], [0, 0, 1, 1], [], []>} : vector<16x32xbf16>, vector<32x8xbf16>, vector<16x8xf32> -> vector<16x8xf32>
    %36 = vector.broadcast %4 : vector<1x8xf32> to vector<16x8xf32>
    %37 = arith.addf %35, %36 : vector<16x8xf32>
    %38 = arith.truncf %37 : vector<16x8xf32> to vector<16x8xbf16>
    %cst_18 = arith.constant dense<0.000000e+00> : vector<16x2xf32>
    %39 = tpu.matmul %38, %5, %cst_18 {dimension_numbers = #tpu.dot_dimension_numbers<[1], [0], [0], [1], [0, 0, 1, 1], [], []>} : vector<16x8xbf16>, vector<8x2xbf16>, vector<16x2xf32> -> vector<16x2xf32>
    %cst_19 = arith.constant 1.000000e+00 : f32
    %40 = vector.broadcast %cst_19 : f32 to vector<16x2xf32>
    %41 = arith.mulf %39, %40 : vector<16x2xf32>
    %42 = arith.addf %33, %37 : vector<16x8xf32>
    %43 = arith.truncf %42 : vector<16x8xf32> to vector<16x8xbf16>
    %c0_20 = arith.constant 0 : index
    %c0_21 = arith.constant 0 : index
    %44 = vector.load %arg5[%c0_20, %c0_21] : memref<8x2xbf16, #tpu.memory_space<vmem>>, vector<8x2xbf16>
    %cst_22 = arith.constant dense<0.000000e+00> : vector<16x2xf32>
    %45 = tpu.matmul %43, %44, %cst_22 {dimension_numbers = #tpu.dot_dimension_numbers<[1], [0], [0], [1], [0, 0, 1, 1], [], []>} : vector<16x8xbf16>, vector<8x2xbf16>, vector<16x2xf32> -> vector<16x2xf32>
    %c0_23 = arith.constant 0 : index
    %c0_24 = arith.constant 0 : index
    %46 = vector.load %arg6[%c0_23, %c0_24] : memref<1x2xf32, #tpu.memory_space<vmem>>, vector<1x2xf32>
    %47 = vector.broadcast %46 : vector<1x2xf32> to vector<16x2xf32>
    %48 = arith.addf %45, %47 : vector<16x2xf32>
    %cst_25 = arith.constant dense<0xFF800000> : vector<16xf32>
    %49 = vector.multi_reduction <maximumf>, %48, %cst_25 [1] : vector<16x2xf32> to vector<16xf32>
    %50 = vector.shape_cast %49 : vector<16xf32> to vector<16x1xf32>
    %51 = vector.broadcast %50 : vector<16x1xf32> to vector<16x2xf32>
    %52 = arith.subf %48, %51 : vector<16x2xf32>
    %53 = math.exp %52 : vector<16x2xf32>
    %cst_26 = arith.constant dense<0.000000e+00> : vector<16xf32>
    %54 = vector.multi_reduction <add>, %53, %cst_26 [1] : vector<16x2xf32> to vector<16xf32>
    %55 = vector.shape_cast %54 : vector<16xf32> to vector<16x1xf32>
    %56 = tpu.reciprocal %55 {approx = true} : vector<16x1xf32> -> vector<16x1xf32>
    %57 = vector.broadcast %56 : vector<16x1xf32> to vector<16x2xf32>
    %58 = arith.mulf %53, %57 : vector<16x2xf32>
    %cst_27 = arith.constant 0.000000e+00 : f32
    %59 = vector.broadcast %cst_27 : f32 to vector<16x8xf32>
    %60 = vector.extract_strided_slice %14 {offsets = [0, 0], sizes = [16, 1], strides = [1, 1]} : vector<16x2xf32> to vector<16x1xf32>
    %61 = vector.extract_strided_slice %23 {offsets = [0, 0], sizes = [16, 1], strides = [1, 1]} : vector<16x2xf32> to vector<16x1xf32>
    %62 = vector.extract_strided_slice %32 {offsets = [0, 0], sizes = [16, 1], strides = [1, 1]} : vector<16x2xf32> to vector<16x1xf32>
    %63 = vector.extract_strided_slice %41 {offsets = [0, 0], sizes = [16, 1], strides = [1, 1]} : vector<16x2xf32> to vector<16x1xf32>
    %64 = arith.maximumf %60, %61 : vector<16x1xf32>
    %65 = arith.maximumf %64, %62 : vector<16x1xf32>
    %66 = arith.maximumf %65, %63 : vector<16x1xf32>
    %67 = arith.subf %60, %66 : vector<16x1xf32>
    %68 = math.exp %67 : vector<16x1xf32>
    %69 = arith.subf %61, %66 : vector<16x1xf32>
    %70 = math.exp %69 : vector<16x1xf32>
    %71 = arith.subf %62, %66 : vector<16x1xf32>
    %72 = math.exp %71 : vector<16x1xf32>
    %73 = arith.subf %63, %66 : vector<16x1xf32>
    %74 = math.exp %73 : vector<16x1xf32>
    %75 = arith.addf %68, %70 : vector<16x1xf32>
    %76 = arith.addf %75, %72 : vector<16x1xf32>
    %77 = arith.addf %76, %74 : vector<16x1xf32>
    %78 = tpu.reciprocal %77 {approx = true} : vector<16x1xf32> -> vector<16x1xf32>
    %79 = arith.mulf %68, %78 : vector<16x1xf32>
    %80 = vector.broadcast %79 : vector<16x1xf32> to vector<16x8xf32>
    %81 = arith.mulf %80, %10 : vector<16x8xf32>
    %82 = arith.mulf %70, %78 : vector<16x1xf32>
    %83 = vector.broadcast %82 : vector<16x1xf32> to vector<16x8xf32>
    %84 = arith.mulf %83, %19 : vector<16x8xf32>
    %85 = arith.addf %81, %84 : vector<16x8xf32>
    %86 = arith.mulf %72, %78 : vector<16x1xf32>
    %87 = vector.broadcast %86 : vector<16x1xf32> to vector<16x8xf32>
    %88 = arith.mulf %87, %28 : vector<16x8xf32>
    %89 = arith.addf %85, %88 : vector<16x8xf32>
    %90 = arith.mulf %74, %78 : vector<16x1xf32>
    %91 = vector.broadcast %90 : vector<16x1xf32> to vector<16x8xf32>
    %92 = arith.mulf %91, %37 : vector<16x8xf32>
    %93 = arith.addf %89, %92 : vector<16x8xf32>
    %94 = arith.truncf %93 : vector<16x8xf32> to vector<16x8xbf16>
    %c0_28 = arith.constant 0 : index
    %c0_29 = arith.constant 0 : index
    %c0_30 = arith.constant 0 : index
    %95 = vector.load %arg7[%c0_28, %c0_29, %c0_30] : memref<2x8x8xbf16, #tpu.memory_space<vmem>>, vector<1x8x8xbf16>
    %96 = vector.shape_cast %95 : vector<1x8x8xbf16> to vector<8x8xbf16>
    %cst_31 = arith.constant dense<0.000000e+00> : vector<16x8xf32>
    %97 = tpu.matmul %94, %96, %cst_31 {dimension_numbers = #tpu.dot_dimension_numbers<[1], [0], [0], [1], [0, 0, 1, 1], [], []>} : vector<16x8xbf16>, vector<8x8xbf16>, vector<16x8xf32> -> vector<16x8xf32>
    %c0_32 = arith.constant 0 : index
    %c0_33 = arith.constant 0 : index
    %98 = vector.load %arg8[%c0_32, %c0_33] : memref<2x8xf32, #tpu.memory_space<vmem>>, vector<1x8xf32>
    %99 = vector.broadcast %98 : vector<1x8xf32> to vector<16x8xf32>
    %100 = arith.addf %97, %99 : vector<16x8xf32>
    %101 = vector.extract_strided_slice %58 {offsets = [0, 0], sizes = [16, 1], strides = [1, 1]} : vector<16x2xf32> to vector<16x1xf32>
    %102 = vector.broadcast %101 : vector<16x1xf32> to vector<16x8xf32>
    %103 = arith.mulf %102, %100 : vector<16x8xf32>
    %104 = arith.addf %59, %103 : vector<16x8xf32>
    %105 = vector.extract_strided_slice %14 {offsets = [0, 1], sizes = [16, 1], strides = [1, 1]} : vector<16x2xf32> to vector<16x1xf32>
    %106 = vector.extract_strided_slice %23 {offsets = [0, 1], sizes = [16, 1], strides = [1, 1]} : vector<16x2xf32> to vector<16x1xf32>
    %107 = vector.extract_strided_slice %32 {offsets = [0, 1], sizes = [16, 1], strides = [1, 1]} : vector<16x2xf32> to vector<16x1xf32>
    %108 = vector.extract_strided_slice %41 {offsets = [0, 1], sizes = [16, 1], strides = [1, 1]} : vector<16x2xf32> to vector<16x1xf32>
    %109 = arith.maximumf %105, %106 : vector<16x1xf32>
    %110 = arith.maximumf %109, %107 : vector<16x1xf32>
    %111 = arith.maximumf %110, %108 : vector<16x1xf32>
    %112 = arith.subf %105, %111 : vector<16x1xf32>
    %113 = math.exp %112 : vector<16x1xf32>
    %114 = arith.subf %106, %111 : vector<16x1xf32>
    %115 = math.exp %114 : vector<16x1xf32>
    %116 = arith.subf %107, %111 : vector<16x1xf32>
    %117 = math.exp %116 : vector<16x1xf32>
    %118 = arith.subf %108, %111 : vector<16x1xf32>
    %119 = math.exp %118 : vector<16x1xf32>
    %120 = arith.addf %113, %115 : vector<16x1xf32>
    %121 = arith.addf %120, %117 : vector<16x1xf32>
    %122 = arith.addf %121, %119 : vector<16x1xf32>
    %123 = tpu.reciprocal %122 {approx = true} : vector<16x1xf32> -> vector<16x1xf32>
    %124 = arith.mulf %113, %123 : vector<16x1xf32>
    %125 = vector.broadcast %124 : vector<16x1xf32> to vector<16x8xf32>
    %126 = arith.mulf %125, %10 : vector<16x8xf32>
    %127 = arith.mulf %115, %123 : vector<16x1xf32>
    %128 = vector.broadcast %127 : vector<16x1xf32> to vector<16x8xf32>
    %129 = arith.mulf %128, %19 : vector<16x8xf32>
    %130 = arith.addf %126, %129 : vector<16x8xf32>
    %131 = arith.mulf %117, %123 : vector<16x1xf32>
    %132 = vector.broadcast %131 : vector<16x1xf32> to vector<16x8xf32>
    %133 = arith.mulf %132, %28 : vector<16x8xf32>
    %134 = arith.addf %130, %133 : vector<16x8xf32>
    %135 = arith.mulf %119, %123 : vector<16x1xf32>
    %136 = vector.broadcast %135 : vector<16x1xf32> to vector<16x8xf32>
    %137 = arith.mulf %136, %37 : vector<16x8xf32>
    %138 = arith.addf %134, %137 : vector<16x8xf32>
    %139 = arith.truncf %138 : vector<16x8xf32> to vector<16x8xbf16>
    %c1 = arith.constant 1 : index
    %c0_34 = arith.constant 0 : index
    %c0_35 = arith.constant 0 : index
    %140 = vector.load %arg7[%c1, %c0_34, %c0_35] : memref<2x8x8xbf16, #tpu.memory_space<vmem>>, vector<1x8x8xbf16>
    %141 = vector.shape_cast %140 : vector<1x8x8xbf16> to vector<8x8xbf16>
    %cst_36 = arith.constant dense<0.000000e+00> : vector<16x8xf32>
    %142 = tpu.matmul %139, %141, %cst_36 {dimension_numbers = #tpu.dot_dimension_numbers<[1], [0], [0], [1], [0, 0, 1, 1], [], []>} : vector<16x8xbf16>, vector<8x8xbf16>, vector<16x8xf32> -> vector<16x8xf32>
    %c1_37 = arith.constant 1 : index
    %c0_38 = arith.constant 0 : index
    %143 = vector.load %arg8[%c1_37, %c0_38] : memref<2x8xf32, #tpu.memory_space<vmem>>, vector<1x8xf32>
    %144 = vector.broadcast %143 : vector<1x8xf32> to vector<16x8xf32>
    %145 = arith.addf %142, %144 : vector<16x8xf32>
    %146 = vector.extract_strided_slice %58 {offsets = [0, 1], sizes = [16, 1], strides = [1, 1]} : vector<16x2xf32> to vector<16x1xf32>
    %147 = vector.broadcast %146 : vector<16x1xf32> to vector<16x8xf32>
    %148 = arith.mulf %147, %145 : vector<16x8xf32>
    %149 = arith.addf %104, %148 : vector<16x8xf32>
    %150 = arith.negf %149 : vector<16x8xf32>
    %151 = math.exp %150 : vector<16x8xf32>
    %cst_39 = arith.constant 1.000000e+00 : f32
    %152 = vector.broadcast %cst_39 : f32 to vector<16x8xf32>
    %153 = arith.addf %152, %151 : vector<16x8xf32>
    %154 = arith.divf %152, %153 : vector<16x8xf32>
    %c0_40 = arith.constant 0 : index
    %c0_41 = arith.constant 0 : index
    %155 = vector.load %arg9[%c0_40, %c0_41] : memref<16x8xf32, #tpu.memory_space<vmem>>, vector<16x8xf32>
    tpu.vector_store %arg9[%c0_40, %c0_41], %154 {strides = array<i32>} : memref<16x8xf32, #tpu.memory_space<vmem>>, vector<16x8xf32>,
    return
  }
  func.func @transform_0(%arg0: i32) -> (i32, i32) {
    %c0_i32 = arith.constant 0 : i32
    %c0_i32_0 = arith.constant 0 : i32
    return %arg0, %c0_i32 : i32, i32
  }
  func.func @transform_1(%arg0: i32) -> (i32, i32) {
    %c0_i32 = arith.constant 0 : i32
    %c0_i32_0 = arith.constant 0 : i32
    %c0_i32_1 = arith.constant 0 : i32
    return %c0_i32, %c0_i32_0 : i32, i32
  }
  func.func @transform_2(%arg0: i32) -> (i32, i32) {
    %c0_i32 = arith.constant 0 : i32
    %c0_i32_0 = arith.constant 0 : i32
    %c0_i32_1 = arith.constant 0 : i32
    return %c0_i32, %c0_i32_0 : i32, i32
  }
  func.func @transform_3(%arg0: i32) -> (i32, i32) {
    %c0_i32 = arith.constant 0 : i32
    %c0_i32_0 = arith.constant 0 : i32
    %c0_i32_1 = arith.constant 0 : i32
    return %c0_i32, %c0_i32_0 : i32, i32
  }
  func.func @transform_4(%arg0: i32) -> (i32, i32) {
    %c0_i32 = arith.constant 0 : i32
    %c0_i32_0 = arith.constant 0 : i32
    %c0_i32_1 = arith.constant 0 : i32
    return %c0_i32, %c0_i32_0 : i32, i32
  }
  func.func @transform_5(%arg0: i32) -> (i32, i32) {
    %c0_i32 = arith.constant 0 : i32
    %c0_i32_0 = arith.constant 0 : i32
    %c0_i32_1 = arith.constant 0 : i32
    return %c0_i32, %c0_i32_0 : i32, i32
  }
  func.func @transform_6(%arg0: i32) -> (i32, i32, i32) {
    %c0_i32 = arith.constant 0 : i32
    %c0_i32_0 = arith.constant 0 : i32
    %c0_i32_1 = arith.constant 0 : i32
    %c0_i32_2 = arith.constant 0 : i32
    return %c0_i32, %c0_i32_0, %c0_i32_1 : i32, i32, i32
  }
  func.func @transform_7(%arg0: i32) -> (i32, i32) {
    %c0_i32 = arith.constant 0 : i32
    %c0_i32_0 = arith.constant 0 : i32
    %c0_i32_1 = arith.constant 0 : i32
    return %c0_i32, %c0_i32_0 : i32, i32
  }
  func.func @transform_8(%arg0: i32) -> (i32, i32) {
    %c0_i32 = arith.constant 0 : i32
    %c0_i32_0 = arith.constant 0 : i32
    return %arg0, %c0_i32 : i32, i32
  }
}

</mosaic_0001>

<llo_original>
// kernel: tpu_custom_call.1
$region0: #{tpu_custom_call.1}
  #allocation0 [shape = 'u32[]', space=smem, size = 0x4, offset = 0x4, fixed_abs, tag = 'smem constant byte address 0x4 - core index']
  #allocation1 [shape = 'u32[144,128]{1,0:T(1,128)}', space=vmem, size = 0x12000, scoped, tag = 'internal scratch']
  %s0 = inlined_call_operand.vmem [shape: bf16[32,128], index: 0, kind: input, shape index: {}]
  %s1 = inlined_call_operand.vmem [shape: bf16[32,8], index: 1, kind: input, shape index: {}]
  %s2 = inlined_call_operand.vmem [shape: f32[1,8], index: 2, kind: input, shape index: {}]
  %s3 = inlined_call_operand.vmem [shape: bf16[8,2], index: 3, kind: input, shape index: {}]
  %s4 = inlined_call_operand.vmem [shape: bf16[8,2], index: 4, kind: input, shape index: {}]
  %s5 = inlined_call_operand.vmem [shape: f32[1,2], index: 5, kind: input, shape index: {}]
  %s6 = inlined_call_operand.vmem [shape: bf16[2,8,8], index: 6, kind: input, shape index: {}]
  %s7 = inlined_call_operand.vmem [shape: f32[2,8], index: 7, kind: input, shape index: {}]
  %s8 = inlined_call_operand.vmem [shape: f32[32,8], index: 8, kind: output, shape index: {}]
  %s9 = sld [smem:[#allocation0]]
  $region65: #{tpu_custom_call.1} parent=0
    _
  %s11 = ssub.s32 1, %s9
  %s12 = scalar_select 0, %s11, %s9
  loop: start=0, step=1, limit=4
  $region2: #{tpu_custom_call.1} parent=0 // loop_pre_header
    _
  $region3: #{tpu_custom_call.1} parent=0 // loop_header
    %s14 = sphi 0, %s18
    %p15 = scmp.ge.s32.totalorder %s14, 4
    %s24 = sphi 0, %s26
    %s27 = sphi 0, %s24
    %s28 = sphi 0, %s27
    %s44 = sphi 0, %s28
    %s48 = sphi 0, %s48
    %s50 = sphi 0, %s48
    %s51 = sphi 0, %s50
    %s65 = sphi 0, %s51
    %s69 = sphi 0, %s69
    %s71 = sphi 0, %s69
    %s72 = sphi 0, %s71
    %s86 = sphi 0, %s72
    %s90 = sphi 0, %s90
    %s92 = sphi 0, %s90
    %s93 = sphi 0, %s92
    %s107 = sphi 0, %s93
    %s111 = sphi 0, %s111
    %s113 = sphi 0, %s111
    %s114 = sphi 0, %s113
    %s128 = sphi 0, %s114
    %s132 = sphi 0, %s132
    %s134 = sphi 0, %s132
    %s135 = sphi 0, %s134
    %s149 = sphi 0, %s135
    %s153 = sphi 0, %s153
    %s155 = sphi 0, %s153
    %s156 = sphi 0, %s155
    %s170 = sphi 0, %s156
    %s174 = sphi 0, %s174
    %s176 = sphi 0, %s174
    %s177 = sphi 0, %s176
    %s191 = sphi 0, %s177
    %s197 = sphi 0, %s199
    %s200 = sphi 0, %s197
    %s201 = sphi 0, %s200
    %s217 = sphi 0, %s201
  $region4: #{tpu_custom_call.1} parent=0 // loop_header_branch
    %17 = sbr.rel (%p15) target = $region8
  $region5: #{tpu_custom_call.1} parent=0 // loop_body
    %s19 = ssub.s32 %s14, 1
    %s20 = ssub.s32 %s14, 2
    %s21 = sadd.s32 %s14, 1
    %s22 = ssub.s32 %s14, %s21
    %p23 = scmp.eq.s32.totalorder %s22, 0
    %s25 = sadd.s32 %s24, 1
    %s26 = scalar_select %p23, %s24, %s25
    %p29 = pneg %p23
    %p30 = scmp.eq.s32.totalorder %s14, 1
    %p31 = por %p29, %p30
    %p32 = scmp.ne.s32.totalorder %s24, %s27
    %p33 = scmp.eq.s32.totalorder %s14, 0
    %p34 = por %p32, %p33
    %p35 = scmp.ne.s32.totalorder %s24, %s27
    %p36 = scmp.eq.s32.totalorder %s19, 1
    %p37 = por %p35, %p36
    %p38 = scmp.ne.s32.totalorder %s27, %s28
    %p39 = scmp.eq.s32.totalorder %s19, 0
    %p40 = por %p38, %p39
    %p41 = scmp.ne.s32.totalorder %s27, %s28
    %p42 = scmp.eq.s32.totalorder %s20, 1
    %p43 = por %p41, %p42
    %p45 = scmp.ne.s32.totalorder %s28, %s44
    %p46 = scmp.eq.s32.totalorder %s20, 0
    %p47 = por %p45, %p46
    %s49 = sadd.s32 %s48, 1
    %p52 = scmp.eq.s32.totalorder %s14, 1
    %p53 = scmp.ne.s32.totalorder %s48, %s50
    %p54 = scmp.eq.s32.totalorder %s14, 0
    %p55 = por %p53, %p54
    %p56 = scmp.ne.s32.totalorder %s48, %s50
    %p57 = scmp.eq.s32.totalorder %s19, 1
    %p58 = por %p56, %p57
    %p59 = scmp.ne.s32.totalorder %s50, %s51
    %p60 = scmp.eq.s32.totalorder %s19, 0
    %p61 = por %p59, %p60
    %p62 = scmp.ne.s32.totalorder %s50, %s51
    %p63 = scmp.eq.s32.totalorder %s20, 1
    %p64 = por %p62, %p63
    %p66 = scmp.ne.s32.totalorder %s51, %s65
    %p67 = scmp.eq.s32.totalorder %s20, 0
    %p68 = por %p66, %p67
    %s70 = sadd.s32 %s69, 1
    %p73 = scmp.eq.s32.totalorder %s14, 1
    %p74 = scmp.ne.s32.totalorder %s69, %s71
    %p75 = scmp.eq.s32.totalorder %s14, 0
    %p76 = por %p74, %p75
    %p77 = scmp.ne.s32.totalorder %s69, %s71
    %p78 = scmp.eq.s32.totalorder %s19, 1
    %p79 = por %p77, %p78
    %p80 = scmp.ne.s32.totalorder %s71, %s72
    %p81 = scmp.eq.s32.totalorder %s19, 0
    %p82 = por %p80, %p81
    %p83 = scmp.ne.s32.totalorder %s71, %s72
    %p84 = scmp.eq.s32.totalorder %s20, 1
    %p85 = por %p83, %p84
    %p87 = scmp.ne.s32.totalorder %s72, %s86
    %p88 = scmp.eq.s32.totalorder %s20, 0
    %p89 = por %p87, %p88
    %s91 = sadd.s32 %s90, 1
    %p94 = scmp.eq.s32.totalorder %s14, 1
    %p95 = scmp.ne.s32.totalorder %s90, %s92
    %p96 = scmp.eq.s32.totalorder %s14, 0
    %p97 = por %p95, %p96
    %p98 = scmp.ne.s32.totalorder %s90, %s92
    %p99 = scmp.eq.s32.totalorder %s19, 1
    %p100 = por %p98, %p99
    %p101 = scmp.ne.s32.totalorder %s92, %s93
    %p102 = scmp.eq.s32.totalorder %s19, 0
    %p103 = por %p101, %p102
    %p104 = scmp.ne.s32.totalorder %s92, %s93
    %p105 = scmp.eq.s32.totalorder %s20, 1
    %p106 = por %p104, %p105
    %p108 = scmp.ne.s32.totalorder %s93, %s107
    %p109 = scmp.eq.s32.totalorder %s20, 0
    %p110 = por %p108, %p109
    %s112 = sadd.s32 %s111, 1
    %p115 = scmp.eq.s32.totalorder %s14, 1
    %p116 = scmp.ne.s32.totalorder %s111, %s113
    %p117 = scmp.eq.s32.totalorder %s14, 0
    %p118 = por %p116, %p117
    %p119 = scmp.ne.s32.totalorder %s111, %s113
    %p120 = scmp.eq.s32.totalorder %s19, 1
    %p121 = por %p119, %p120
    %p122 = scmp.ne.s32.totalorder %s113, %s114
    %p123 = scmp.eq.s32.totalorder %s19, 0
    %p124 = por %p122, %p123
    %p125 = scmp.ne.s32.totalorder %s113, %s114
    %p126 = scmp.eq.s32.totalorder %s20, 1
    %p127 = por %p125, %p126
    %p129 = scmp.ne.s32.totalorder %s114, %s128
    %p130 = scmp.eq.s32.totalorder %s20, 0
    %p131 = por %p129, %p130
    %s133 = sadd.s32 %s132, 1
    %p136 = scmp.eq.s32.totalorder %s14, 1
    %p137 = scmp.ne.s32.totalorder %s132, %s134
    %p138 = scmp.eq.s32.totalorder %s14, 0
    %p139 = por %p137, %p138
    %p140 = scmp.ne.s32.totalorder %s132, %s134
    %p141 = scmp.eq.s32.totalorder %s19, 1
    %p142 = por %p140, %p141
    %p143 = scmp.ne.s32.totalorder %s134, %s135
    %p144 = scmp.eq.s32.totalorder %s19, 0
    %p145 = por %p143, %p144
    %p146 = scmp.ne.s32.totalorder %s134, %s135
    %p147 = scmp.eq.s32.totalorder %s20, 1
    %p148 = por %p146, %p147
    %p150 = scmp.ne.s32.totalorder %s135, %s149
    %p151 = scmp.eq.s32.totalorder %s20, 0
    %p152 = por %p150, %p151
    %s154 = sadd.s32 %s153, 1
    %p157 = scmp.eq.s32.totalorder %s14, 1
    %p158 = scmp.ne.s32.totalorder %s153, %s155
    %p159 = scmp.eq.s32.totalorder %s14, 0
    %p160 = por %p158, %p159
    %p161 = scmp.ne.s32.totalorder %s153, %s155
    %p162 = scmp.eq.s32.totalorder %s19, 1
    %p163 = por %p161, %p162
    %p164 = scmp.ne.s32.totalorder %s155, %s156
    %p165 = scmp.eq.s32.totalorder %s19, 0
    %p166 = por %p164, %p165
    %p167 = scmp.ne.s32.totalorder %s155, %s156
    %p168 = scmp.eq.s32.totalorder %s20, 1
    %p169 = por %p167, %p168
    %p171 = scmp.ne.s32.totalorder %s156, %s170
    %p172 = scmp.eq.s32.totalorder %s20, 0
    %p173 = por %p171, %p172
    %s175 = sadd.s32 %s174, 1
    %p178 = scmp.eq.s32.totalorder %s14, 1
    %p179 = scmp.ne.s32.totalorder %s174, %s176
    %p180 = scmp.eq.s32.totalorder %s14, 0
    %p181 = por %p179, %p180
    %p182 = scmp.ne.s32.totalorder %s174, %s176
    %p183 = scmp.eq.s32.totalorder %s19, 1
    %p184 = por %p182, %p183
    %p185 = scmp.ne.s32.totalorder %s176, %s177
    %p186 = scmp.eq.s32.totalorder %s19, 0
    %p187 = por %p185, %p186
    %p188 = scmp.ne.s32.totalorder %s176, %s177
    %p189 = scmp.eq.s32.totalorder %s20, 1
    %p190 = por %p188, %p189
    %p192 = scmp.ne.s32.totalorder %s177, %s191
    %p193 = scmp.eq.s32.totalorder %s20, 0
    %p194 = por %p192, %p193
    %s195 = ssub.s32 %s14, %s21
    %p196 = scmp.eq.s32.totalorder %s195, 0
    %s198 = sadd.s32 %s197, 1
    %s199 = scalar_select %p196, %s197, %s198
    %p202 = pneg %p196
    %p203 = scmp.eq.s32.totalorder %s14, 1
    %p204 = por %p202, %p203
    %p205 = scmp.ne.s32.totalorder %s197, %s200
    %p206 = scmp.eq.s32.totalorder %s14, 0
    %p207 = por %p205, %p206
    %p208 = scmp.ne.s32.totalorder %s197, %s200
    %p209 = scmp.eq.s32.totalorder %s19, 1
    %p210 = por %p208, %p209
    %p211 = scmp.ne.s32.totalorder %s200, %s201
    %p212 = scmp.eq.s32.totalorder %s19, 0
    %p213 = por %p211, %p212
    %p214 = scmp.ne.s32.totalorder %s200, %s201
    %p215 = scmp.eq.s32.totalorder %s20, 1
    %p216 = por %p214, %p215
    %p218 = scmp.ne.s32.totalorder %s201, %s217
    %p219 = scmp.eq.s32.totalorder %s20, 0
    %p220 = por %p218, %p219
    %p221 = scmp.le.s32.totalorder 1, %s14
    %p222 = scmp.lt.s32.totalorder %s14, 3
    %p223 = pnand %p221, %p222
    %p224 = pneg %p223
    // Predicated region
    $region9: #{tpu_custom_call.1} parent=5 // pred_check
      _
    $region10: #{tpu_custom_call.1} parent=5 // pred_check_branch
      %226 = sbr.rel (%p223) target = $region12
    $region11: #{tpu_custom_call.1} parent=5 // pred_region
      %s227 = ssub.s32 %s14, 1
      // Predicated region
      $region13: #{tpu_custom_call.1} parent=11 // pred_check
        %p228 = pneg %p61
      $region14: #{tpu_custom_call.1} parent=11 // pred_check_branch
        %230 = sbr.rel (%p228) target = $region16
      $region15: #{tpu_custom_call.1} parent=11 // pred_region
        _
      $region16: #{tpu_custom_call.1} parent=11 // pred_fallthru
        _
      // Predicated region
      $region17: #{tpu_custom_call.1} parent=11 // pred_check
        %p231 = pneg %p82
      $region18: #{tpu_custom_call.1} parent=11 // pred_check_branch
        %233 = sbr.rel (%p231) target = $region20
      $region19: #{tpu_custom_call.1} parent=11 // pred_region
        _
      $region20: #{tpu_custom_call.1} parent=11 // pred_fallthru
        _
      // Predicated region
      $region21: #{tpu_custom_call.1} parent=11 // pred_check
        %p234 = pneg %p103
      $region22: #{tpu_custom_call.1} parent=11 // pred_check_branch
        %236 = sbr.rel (%p234) target = $region24
      $region23: #{tpu_custom_call.1} parent=11 // pred_region
        _
      $region24: #{tpu_custom_call.1} parent=11 // pred_fallthru
        _
      // Predicated region
      $region25: #{tpu_custom_call.1} parent=11 // pred_check
        %p237 = pneg %p124
      $region26: #{tpu_custom_call.1} parent=11 // pred_check_branch
        %239 = sbr.rel (%p237) target = $region28
      $region27: #{tpu_custom_call.1} parent=11 // pred_region
        _
      $region28: #{tpu_custom_call.1} parent=11 // pred_fallthru
        _
      // Predicated region
      $region29: #{tpu_custom_call.1} parent=11 // pred_check
        %p240 = pneg %p145
      $region30: #{tpu_custom_call.1} parent=11 // pred_check_branch
        %242 = sbr.rel (%p240) target = $region32
      $region31: #{tpu_custom_call.1} parent=11 // pred_region
        _
      $region32: #{tpu_custom_call.1} parent=11 // pred_fallthru
        _
      // Predicated region
      $region33: #{tpu_custom_call.1} parent=11 // pred_check
        %p243 = pneg %p166
      $region34: #{tpu_custom_call.1} parent=11 // pred_check_branch
        %245 = sbr.rel (%p243) target = $region36
      $region35: #{tpu_custom_call.1} parent=11 // pred_region
        _
      $region36: #{tpu_custom_call.1} parent=11 // pred_fallthru
        _
      // Predicated region
      $region37: #{tpu_custom_call.1} parent=11 // pred_check
        %p246 = pneg %p187
      $region38: #{tpu_custom_call.1} parent=11 // pred_check_branch
        %248 = sbr.rel (%p246) target = $region40
      $region39: #{tpu_custom_call.1} parent=11 // pred_region
        _
      $region40: #{tpu_custom_call.1} parent=11 // pred_fallthru
        _
    $region12: #{tpu_custom_call.1} parent=5 // pred_fallthru
      _
    %p249 = scmp.lt.s32.totalorder %s14, 2
    // Predicated region
    $region41: #{tpu_custom_call.1} parent=5 // pred_check
      %p250 = pneg %p249
    $region42: #{tpu_custom_call.1} parent=5 // pred_check_branch
      %252 = sbr.rel (%p250) target = $region44
    $region43: #{tpu_custom_call.1} parent=5 // pred_region
      // Predicated region
      $region45: #{tpu_custom_call.1} parent=43 // pred_check
        %p253 = pneg %p34
      $region46: #{tpu_custom_call.1} parent=43 // pred_check_branch
        %255 = sbr.rel (%p253) target = $region48
      $region47: #{tpu_custom_call.1} parent=43 // pred_region
        %s256 = smul.u32 2, %s14
        %p257 = scmp.lt.s32.totalorder %s256, 3
        %s258 = scalar_select %p257, %s256, 3
        %s259 = smul.addr %s258, 4
        %s260 = scalar_lea.vmem %s0, %s259
        %s261 = smul.u32 2, %s14
      $region48: #{tpu_custom_call.1} parent=43 // pred_fallthru
        _
    $region44: #{tpu_custom_call.1} parent=5 // pred_fallthru
      _
    %p262 = scmp.le.s32.totalorder 1, %s14
    %p263 = scmp.lt.s32.totalorder %s14, 3
    %p264 = pnand %p262, %p263
    %p265 = pneg %p264
    // Predicated region
    $region49: #{tpu_custom_call.1} parent=5 // pred_check
      _
    $region50: #{tpu_custom_call.1} parent=5 // pred_check_branch
      %267 = sbr.rel (%p264) target = $region52
    $region51: #{tpu_custom_call.1} parent=5 // pred_region
      %s268 = ssub.s32 %s14, 1
      %s269 = smul.u32 2, %s19
      %p270 = scmp.lt.s32.totalorder %s269, 3
      %s271 = scalar_select %p270, %s269, 3
      %s272 = smul.addr %s271, 4
      %s273 = scalar_lea.vmem %s0, %s272
      %p274 = pneg %p40
      %p275 = pneg %p37
      %p276 = pneg %p61
      %p277 = pneg %p58
      %p278 = pneg %p82
      %p279 = pneg %p79
      %p280 = pneg %p103
      %p281 = pneg %p100
      %p282 = pneg %p124
      %p283 = pneg %p121
      %p284 = pneg %p145
      %p285 = pneg %p142
      %p286 = pneg %p166
      %p287 = pneg %p163
      %p288 = pneg %p187
      %p289 = pneg %p184
      %p290 = pneg %p213
      %p291 = pneg %p210
      %s292 = smul.u32 2, %s19
      %p293 = scmp.lt.s32.totalorder %s292, 3
      %s294 = scalar_select %p293, %s292, 3
      %s295 = smul.addr %s294, 8
      %s296 = scalar_lea.vmem %s8, %s295
      %s297 = smul.u32 2, %s19
      %p298 = scmp.lt.s32.totalorder %s297, 3
      %s299 = scalar_select %p298, %s297, 3
      %s300 = smul.addr %s299, 4
      %s301 = scalar_lea.vmem %s0, %s300
      %s302 = smul.u32 2, %s19
      %s303 = smul.u32 2, %s19
      %p304 = scmp.lt.s32.totalorder %s303, 3
      %s305 = scalar_select %p304, %s303, 3
      %s306 = smul.addr %s305, 8
      %s307 = scalar_lea.vmem %s8, %s306
      %s308 = smul.u32 2, %s19
      %v310 = vld [vmem:[%s301] sm:$0xf]
      %v311 = vld [vmem:[%s301 + $0x4] sm:$0xf]
      %v312 = vmax.bf16 %v310, 0
      %v313 = vmax.bf16 %v311, 0
      %v314 = vld [vmem:[%s1] sm:$0xf]
      %v315 = vld [vmem:[%s1 + $0x4] sm:$0xf]
      %v316 = vld [vmem:[%s1 + $0x8] sm:$0xf]
      %v317 = vld [vmem:[%s1 + $0xc] sm:$0xf]
      %v318 = vld [vmem:[%s2] sm:$0x1]
      %v319 = vld [vmem:[%s3] sm:$0xf]
      %v321 = vlaneseq
      %v322 = vshrl.u32 %v321, 7
      %v323 = vsub.s32 0, %v322
      %v324 = vrot.slane %v318, %v323
      %v328 = vunpack.c.l.b16 %v312
      %v329 = vunpack.c.l.b16 %v313
      %v330 = vpack.c.b16 %v329, %v328
      %v335 = vunpack.c.l.b16 %v314
      %v336 = vunpack.c.l.b16 %v315
      %v337 = vunpack.c.l.b16 %v316
      %v338 = vunpack.c.l.b16 %v317
      %v339 = vpack.c.b16 %v336, %v335
      %v340 = vpack.c.b16 %v338, %v337
      %vm343 = vcmask 261120
      %v345 = vsel %vm343, %v330, 0
      %347 = vmatprep.subr.bf16.mxu0 0
      %348 = vmatpush1.bf16.msra.mxu0 %v339
      %349 = vmatprep.subr.bf16.mxu0 0
      %350 = vmatpush1.bf16.msra.mxu0 %v340
      %351 = vmatprep.subr.bf16.mxu0 0
      %352 = vmatpush1.bf16.msra.mxu0 0
      %353 = vmatprep.subr.bf16.mxu0 0
      %354 = vmatpush1.bf16.msra.mxu0 0
      %355 = vmatprep.subr.bf16.mxu0 0
      %356 = vmatpush1.bf16.msra.mxu0 0
      %357 = vmatprep.subr.bf16.mxu0 0
      %358 = vmatpush1.bf16.msra.mxu0 0
      %359 = vmatprep.subr.bf16.mxu0 0
      %360 = vmatpush1.bf16.msra.mxu0 0
      %361 = vmatprep.subr.bf16.mxu0 0
      %362 = vmatpush1.bf16.msra.mxu0 0
      %363 = vmatprep.subr.bf16.mxu0 0
      %364 = vmatpush1.bf16.msra.mxu0 0
      %365 = vmatprep.subr.bf16.mxu0 0
      %366 = vmatpush1.bf16.msra.mxu0 0
      %367 = vmatprep.subr.bf16.mxu0 0
      %368 = vmatpush1.bf16.msra.mxu0 0
      %369 = vmatprep.subr.bf16.mxu0 0
      %370 = vmatpush1.bf16.msra.mxu0 0
      %371 = vmatprep.subr.bf16.mxu0 0
      %372 = vmatpush1.bf16.msra.mxu0 0
      %373 = vmatprep.subr.bf16.mxu0 0
      %374 = vmatpush1.bf16.msra.mxu0 0
      %375 = vmatprep.subr.bf16.mxu0 0
      %376 = vmatpush1.bf16.msra.mxu0 0
      %377 = vmatprep.subr.bf16.mxu0 0
      %378 = vmatpush1.bf16.msra.mxu0 0
      %379 = vmatprep.mubr.bf16.mxu0 0
      %380 = vmatmul.mubr.bf16.gmra.mrb[0].mxu0 %v345
      %v381 = vpop.f32.mrb[0].mxu0
      %v382 = vadd.f32 %v324, %v381
      %v383 = vpop.f32.mrb[0].mxu0
      %v384 = vpop.f32.mrb[0].mxu0
      %v385 = vadd.f32 %v324, %v384
      %v386 = vpop.f32.mrb[0].mxu0
      %387 = vdwg.mxu0
      %v388 = vpack.c.bf16 %v385, %v382
      %vm389 = vcmask 64512
      %v391 = vsel %vm389, %v388, 0
      %vm393 = vcmask 1043456
      %v395 = vsel %vm393, %v319, 0
      %397 = vmatprep.subr.bf16.mxu0 0
      %398 = vmatpush1.bf16.msra.mxu0 %v395
      %399 = vmatprep.subr.bf16.mxu0 0
      %400 = vmatpush1.bf16.msra.mxu0 0
      %401 = vmatprep.subr.bf16.mxu0 0
      %402 = vmatpush1.bf16.msra.mxu0 0
      %403 = vmatprep.subr.bf16.mxu0 0
      %404 = vmatpush1.bf16.msra.mxu0 0
      %405 = vmatprep.subr.bf16.mxu0 0
      %406 = vmatpush1.bf16.msra.mxu0 0
      %407 = vmatprep.subr.bf16.mxu0 0
      %408 = vmatpush1.bf16.msra.mxu0 0
      %409 = vmatprep.subr.bf16.mxu0 0
      %410 = vmatpush1.bf16.msra.mxu0 0
      %411 = vmatprep.subr.bf16.mxu0 0
      %412 = vmatpush1.bf16.msra.mxu0 0
      %413 = vmatprep.subr.bf16.mxu0 0
      %414 = vmatpush1.bf16.msra.mxu0 0
      %415 = vmatprep.subr.bf16.mxu0 0
      %416 = vmatpush1.bf16.msra.mxu0 0
      %417 = vmatprep.subr.bf16.mxu0 0
      %418 = vmatpush1.bf16.msra.mxu0 0
      %419 = vmatprep.subr.bf16.mxu0 0
      %420 = vmatpush1.bf16.msra.mxu0 0
      %421 = vmatprep.subr.bf16.mxu0 0
      %422 = vmatpush1.bf16.msra.mxu0 0
      %423 = vmatprep.subr.bf16.mxu0 0
      %424 = vmatpush1.bf16.msra.mxu0 0
      %425 = vmatprep.subr.bf16.mxu0 0
      %426 = vmatpush1.bf16.msra.mxu0 0
      %427 = vmatprep.subr.bf16.mxu0 0
      %428 = vmatpush1.bf16.msra.mxu0 0
      %429 = vmatprep.mubr.bf16.mxu0 0
      %430 = vmatmul.mubr.bf16.gmra.mrb[0].mxu0 %v391
      %v431 = vpop.f32.mrb[0].mxu0
      %v432 = vadd.f32 0.0, %v431
      %v433 = vpop.f32.mrb[0].mxu0
      %v434 = vpop.f32.mrb[0].mxu0
      %v435 = vadd.f32 0.0, %v434
      %v436 = vpop.f32.mrb[0].mxu0
      %437 = vdwg.mxu0
      %v438 = vadd.f32 %v382, 0.0
      %v439 = vadd.f32 %v385, 0.0
      %440 = vrot.lane.b32.xlu0 %v330, 96
      %v441 = vpop.permute.xlu0 %440
      %v443 = vsel %vm343, %v441, 0
      %445 = vmatprep.subr.bf16.mxu0 0
      %446 = vmatpush1.bf16.msra.mxu0 %v339
      %447 = vmatprep.subr.bf16.mxu0 0
      %448 = vmatpush1.bf16.msra.mxu0 %v340
      %449 = vmatprep.subr.bf16.mxu0 0
      %450 = vmatpush1.bf16.msra.mxu0 0
      %451 = vmatprep.subr.bf16.mxu0 0
      %452 = vmatpush1.bf16.msra.mxu0 0
      %453 = vmatprep.subr.bf16.mxu0 0
      %454 = vmatpush1.bf16.msra.mxu0 0
      %455 = vmatprep.subr.bf16.mxu0 0
      %456 = vmatpush1.bf16.msra.mxu0 0
      %457 = vmatprep.subr.bf16.mxu0 0
      %458 = vmatpush1.bf16.msra.mxu0 0
      %459 = vmatprep.subr.bf16.mxu0 0
      %460 = vmatpush1.bf16.msra.mxu0 0
      %461 = vmatprep.subr.bf16.mxu0 0
      %462 = vmatpush1.bf16.msra.mxu0 0
      %463 = vmatprep.subr.bf16.mxu0 0
      %464 = vmatpush1.bf16.msra.mxu0 0
      %465 = vmatprep.subr.bf16.mxu0 0
      %466 = vmatpush1.bf16.msra.mxu0 0
      %467 = vmatprep.subr.bf16.mxu0 0
      %468 = vmatpush1.bf16.msra.mxu0 0
      %469 = vmatprep.subr.bf16.mxu0 0
      %470 = vmatpush1.bf16.msra.mxu0 0
      %471 = vmatprep.subr.bf16.mxu0 0
      %472 = vmatpush1.bf16.msra.mxu0 0
      %473 = vmatprep.subr.bf16.mxu0 0
      %474 = vmatpush1.bf16.msra.mxu0 0
      %475 = vmatprep.subr.bf16.mxu0 0
      %476 = vmatpush1.bf16.msra.mxu0 0
      %477 = vmatprep.mubr.bf16.mxu0 0
      %478 = vmatmul.mubr.bf16.gmra.mrb[0].mxu0 %v443
      %v479 = vpop.f32.mrb[0].mxu0
      %v480 = vadd.f32 %v324, %v479
      %v481 = vpop.f32.mrb[0].mxu0
      %v482 = vpop.f32.mrb[0].mxu0
      %v483 = vadd.f32 %v324, %v482
      %v484 = vpop.f32.mrb[0].mxu0
      %485 = vdwg.mxu0
      %v486 = vpack.c.bf16 %v483, %v480
      %v488 = vsel %vm389, %v486, 0
      %490 = vmatprep.subr.bf16.mxu0 0
      %491 = vmatpush1.bf16.msra.mxu0 %v395
      %492 = vmatprep.subr.bf16.mxu0 0
      %493 = vmatpush1.bf16.msra.mxu0 0
      %494 = vmatprep.subr.bf16.mxu0 0
      %495 = vmatpush1.bf16.msra.mxu0 0
      %496 = vmatprep.subr.bf16.mxu0 0
      %497 = vmatpush1.bf16.msra.mxu0 0
      %498 = vmatprep.subr.bf16.mxu0 0
      %499 = vmatpush1.bf16.msra.mxu0 0
      %500 = vmatprep.subr.bf16.mxu0 0
      %501 = vmatpush1.bf16.msra.mxu0 0
      %502 = vmatprep.subr.bf16.mxu0 0
      %503 = vmatpush1.bf16.msra.mxu0 0
      %504 = vmatprep.subr.bf16.mxu0 0
      %505 = vmatpush1.bf16.msra.mxu0 0
      %506 = vmatprep.subr.bf16.mxu0 0
      %507 = vmatpush1.bf16.msra.mxu0 0
      %508 = vmatprep.subr.bf16.mxu0 0
      %509 = vmatpush1.bf16.msra.mxu0 0
      %510 = vmatprep.subr.bf16.mxu0 0
      %511 = vmatpush1.bf16.msra.mxu0 0
      %512 = vmatprep.subr.bf16.mxu0 0
      %513 = vmatpush1.bf16.msra.mxu0 0
      %514 = vmatprep.subr.bf16.mxu0 0
      %515 = vmatpush1.bf16.msra.mxu0 0
      %516 = vmatprep.subr.bf16.mxu0 0
      %517 = vmatpush1.bf16.msra.mxu0 0
      %518 = vmatprep.subr.bf16.mxu0 0
      %519 = vmatpush1.bf16.msra.mxu0 0
      %520 = vmatprep.subr.bf16.mxu0 0
      %521 = vmatpush1.bf16.msra.mxu0 0
      %522 = vmatprep.mubr.bf16.mxu0 0
      %523 = vmatmul.mubr.bf16.gmra.mrb[0].mxu0 %v488
      %v524 = vpop.f32.mrb[0].mxu0
      %v525 = vadd.f32 0.0, %v524
      %v526 = vpop.f32.mrb[0].mxu0
      %v527 = vpop.f32.mrb[0].mxu0
      %v528 = vadd.f32 0.0, %v527
      %v529 = vpop.f32.mrb[0].mxu0
      %530 = vdwg.mxu0
      %v531 = vadd.f32 %v438, %v480
      %v532 = vadd.f32 %v439, %v483
      %533 = vrot.lane.b32.xlu0 %v330, 64
      %v534 = vpop.permute.xlu0 %533
      %v536 = vsel %vm343, %v534, 0
      %538 = vmatprep.subr.bf16.mxu0 0
      %539 = vmatpush1.bf16.msra.mxu0 %v339
      %540 = vmatprep.subr.bf16.mxu0 0
      %541 = vmatpush1.bf16.msra.mxu0 %v340
      %542 = vmatprep.subr.bf16.mxu0 0
      %543 = vmatpush1.bf16.msra.mxu0 0
      %544 = vmatprep.subr.bf16.mxu0 0
      %545 = vmatpush1.bf16.msra.mxu0 0
      %546 = vmatprep.subr.bf16.mxu0 0
      %547 = vmatpush1.bf16.msra.mxu0 0
      %548 = vmatprep.subr.bf16.mxu0 0
      %549 = vmatpush1.bf16.msra.mxu0 0
      %550 = vmatprep.subr.bf16.mxu0 0
      %551 = vmatpush1.bf16.msra.mxu0 0
      %552 = vmatprep.subr.bf16.mxu0 0
      %553 = vmatpush1.bf16.msra.mxu0 0
      %554 = vmatprep.subr.bf16.mxu0 0
      %555 = vmatpush1.bf16.msra.mxu0 0
      %556 = vmatprep.subr.bf16.mxu0 0
      %557 = vmatpush1.bf16.msra.mxu0 0
      %558 = vmatprep.subr.bf16.mxu0 0
      %559 = vmatpush1.bf16.msra.mxu0 0
      %560 = vmatprep.subr.bf16.mxu0 0
      %561 = vmatpush1.bf16.msra.mxu0 0
      %562 = vmatprep.subr.bf16.mxu0 0
      %563 = vmatpush1.bf16.msra.mxu0 0
      %564 = vmatprep.subr.bf16.mxu0 0
      %565 = vmatpush1.bf16.msra.mxu0 0
      %566 = vmatprep.subr.bf16.mxu0 0
      %567 = vmatpush1.bf16.msra.mxu0 0
      %568 = vmatprep.subr.bf16.mxu0 0
      %569 = vmatpush1.bf16.msra.mxu0 0
      %570 = vmatprep.mubr.bf16.mxu0 0
      %571 = vmatmul.mubr.bf16.gmra.mrb[0].mxu0 %v536
      %v572 = vpop.f32.mrb[0].mxu0
      %v573 = vadd.f32 %v324, %v572
      %v574 = vpop.f32.mrb[0].mxu0
      %v575 = vpop.f32.mrb[0].mxu0
      %v576 = vadd.f32 %v324, %v575
      %v577 = vpop.f32.mrb[0].mxu0
      %578 = vdwg.mxu0
      %v579 = vpack.c.bf16 %v576, %v573
      %v581 = vsel %vm389, %v579, 0
      %583 = vmatprep.subr.bf16.mxu0 0
      %584 = vmatpush1.bf16.msra.mxu0 %v395
      %585 = vmatprep.subr.bf16.mxu0 0
      %586 = vmatpush1.bf16.msra.mxu0 0
      %587 = vmatprep.subr.bf16.mxu0 0
      %588 = vmatpush1.bf16.msra.mxu0 0
      %589 = vmatprep.subr.bf16.mxu0 0
      %590 = vmatpush1.bf16.msra.mxu0 0
      %591 = vmatprep.subr.bf16.mxu0 0
      %592 = vmatpush1.bf16.msra.mxu0 0
      %593 = vmatprep.subr.bf16.mxu0 0
      %594 = vmatpush1.bf16.msra.mxu0 0
      %595 = vmatprep.subr.bf16.mxu0 0
      %596 = vmatpush1.bf16.msra.mxu0 0
      %597 = vmatprep.subr.bf16.mxu0 0
      %598 = vmatpush1.bf16.msra.mxu0 0
      %599 = vmatprep.subr.bf16.mxu0 0
      %600 = vmatpush1.bf16.msra.mxu0 0
      %601 = vmatprep.subr.bf16.mxu0 0
      %602 = vmatpush1.bf16.msra.mxu0 0
      %603 = vmatprep.subr.bf16.mxu0 0
      %604 = vmatpush1.bf16.msra.mxu0 0
      %605 = vmatprep.subr.bf16.mxu0 0
      %606 = vmatpush1.bf16.msra.mxu0 0
      %607 = vmatprep.subr.bf16.mxu0 0
      %608 = vmatpush1.bf16.msra.mxu0 0
      %609 = vmatprep.subr.bf16.mxu0 0
      %610 = vmatpush1.bf16.msra.mxu0 0
      %611 = vmatprep.subr.bf16.mxu0 0
      %612 = vmatpush1.bf16.msra.mxu0 0
      %613 = vmatprep.subr.bf16.mxu0 0
      %614 = vmatpush1.bf16.msra.mxu0 0
      %615 = vmatprep.mubr.bf16.mxu0 0
      %616 = vmatmul.mubr.bf16.gmra.mrb[0].mxu0 %v581
      %v617 = vpop.f32.mrb[0].mxu0
      %v618 = vadd.f32 0.0, %v617
      %v619 = vpop.f32.mrb[0].mxu0
      %v620 = vpop.f32.mrb[0].mxu0
      %v621 = vadd.f32 0.0, %v620
      %v622 = vpop.f32.mrb[0].mxu0
      %623 = vdwg.mxu0
      %v624 = vadd.f32 %v531, %v573
      %v625 = vadd.f32 %v532, %v576
      %626 = vrot.lane.b32.xlu0 %v330, 32
      %v627 = vpop.permute.xlu0 %626
      %v629 = vsel %vm343, %v627, 0
      %631 = vmatprep.subr.bf16.mxu0 0
      %632 = vmatpush1.bf16.msra.mxu0 %v339
      %633 = vmatprep.subr.bf16.mxu0 0
      %634 = vmatpush1.bf16.msra.mxu0 %v340
      %635 = vmatprep.subr.bf16.mxu0 0
      %636 = vmatpush1.bf16.msra.mxu0 0
      %637 = vmatprep.subr.bf16.mxu0 0
      %638 = vmatpush1.bf16.msra.mxu0 0
      %639 = vmatprep.subr.bf16.mxu0 0
      %640 = vmatpush1.bf16.msra.mxu0 0
      %641 = vmatprep.subr.bf16.mxu0 0
      %642 = vmatpush1.bf16.msra.mxu0 0
      %643 = vmatprep.subr.bf16.mxu0 0
      %644 = vmatpush1.bf16.msra.mxu0 0
      %645 = vmatprep.subr.bf16.mxu0 0
      %646 = vmatpush1.bf16.msra.mxu0 0
      %647 = vmatprep.subr.bf16.mxu0 0
      %648 = vmatpush1.bf16.msra.mxu0 0
      %649 = vmatprep.subr.bf16.mxu0 0
      %650 = vmatpush1.bf16.msra.mxu0 0
      %651 = vmatprep.subr.bf16.mxu0 0
      %652 = vmatpush1.bf16.msra.mxu0 0
      %653 = vmatprep.subr.bf16.mxu0 0
      %654 = vmatpush1.bf16.msra.mxu0 0
      %655 = vmatprep.subr.bf16.mxu0 0
      %656 = vmatpush1.bf16.msra.mxu0 0
      %657 = vmatprep.subr.bf16.mxu0 0
      %658 = vmatpush1.bf16.msra.mxu0 0
      %659 = vmatprep.subr.bf16.mxu0 0
      %660 = vmatpush1.bf16.msra.mxu0 0
      %661 = vmatprep.subr.bf16.mxu0 0
      %662 = vmatpush1.bf16.msra.mxu0 0
      %663 = vmatprep.mubr.bf16.mxu0 0
      %664 = vmatmul.mubr.bf16.gmra.mrb[0].mxu0 %v629
      %v665 = vpop.f32.mrb[0].mxu0
      %v666 = vadd.f32 %v324, %v665
      %v667 = vpop.f32.mrb[0].mxu0
      %v668 = vpop.f32.mrb[0].mxu0
      %v669 = vadd.f32 %v324, %v668
      %v670 = vpop.f32.mrb[0].mxu0
      %671 = vdwg.mxu0
      %v672 = vpack.c.bf16 %v669, %v666
      %v674 = vsel %vm389, %v672, 0
      %676 = vmatprep.subr.bf16.mxu0 0
      %677 = vmatpush1.bf16.msra.mxu0 %v395
      %678 = vmatprep.subr.bf16.mxu0 0
      %679 = vmatpush1.bf16.msra.mxu0 0
      %680 = vmatprep.subr.bf16.mxu0 0
      %681 = vmatpush1.bf16.msra.mxu0 0
      %682 = vmatprep.subr.bf16.mxu0 0
      %683 = vmatpush1.bf16.msra.mxu0 0
      %684 = vmatprep.subr.bf16.mxu0 0
      %685 = vmatpush1.bf16.msra.mxu0 0
      %686 = vmatprep.subr.bf16.mxu0 0
      %687 = vmatpush1.bf16.msra.mxu0 0
      %688 = vmatprep.subr.bf16.mxu0 0
      %689 = vmatpush1.bf16.msra.mxu0 0
      %690 = vmatprep.subr.bf16.mxu0 0
      %691 = vmatpush1.bf16.msra.mxu0 0
      %692 = vmatprep.subr.bf16.mxu0 0
      %693 = vmatpush1.bf16.msra.mxu0 0
      %694 = vmatprep.subr.bf16.mxu0 0
      %695 = vmatpush1.bf16.msra.mxu0 0
      %696 = vmatprep.subr.bf16.mxu0 0
      %697 = vmatpush1.bf16.msra.mxu0 0
      %698 = vmatprep.subr.bf16.mxu0 0
      %699 = vmatpush1.bf16.msra.mxu0 0
      %700 = vmatprep.subr.bf16.mxu0 0
      %701 = vmatpush1.bf16.msra.mxu0 0
      %702 = vmatprep.subr.bf16.mxu0 0
      %703 = vmatpush1.bf16.msra.mxu0 0
      %704 = vmatprep.subr.bf16.mxu0 0
      %705 = vmatpush1.bf16.msra.mxu0 0
      %706 = vmatprep.subr.bf16.mxu0 0
      %707 = vmatpush1.bf16.msra.mxu0 0
      %708 = vmatprep.mubr.bf16.mxu0 0
      %709 = vmatmul.mubr.bf16.gmra.mrb[0].mxu0 %v674
      %v710 = vpop.f32.mrb[0].mxu0
      %v711 = vadd.f32 0.0, %v710
      %v712 = vpop.f32.mrb[0].mxu0
      %v713 = vpop.f32.mrb[0].mxu0
      %v714 = vadd.f32 0.0, %v713
      %v715 = vpop.f32.mrb[0].mxu0
      %716 = vdwg.mxu0
      %v717 = vadd.f32 %v624, %v666
      %v718 = vadd.f32 %v625, %v669
      %v719 = vpack.c.bf16 %v718, %v717
      %v720 = vld [vmem:[%s4] sm:$0xf]
      %v721 = vld [vmem:[%s5] sm:$0x1]
      %v723 = vlaneseq
      %v724 = vshrl.u32 %v723, 7
      %v725 = vsub.s32 0, %v724
      %v726 = vrot.slane %v721, %v725
      %v729 = vsel %vm389, %v719, 0
      %v732 = vsel %vm393, %v720, 0
      %734 = vmatprep.subr.bf16.mxu0 0
      %735 = vmatpush1.bf16.msra.mxu0 %v732
      %736 = vmatprep.subr.bf16.mxu0 0
      %737 = vmatpush1.bf16.msra.mxu0 0
      %738 = vmatprep.subr.bf16.mxu0 0
      %739 = vmatpush1.bf16.msra.mxu0 0
      %740 = vmatprep.subr.bf16.mxu0 0
      %741 = vmatpush1.bf16.msra.mxu0 0
      %742 = vmatprep.subr.bf16.mxu0 0
      %743 = vmatpush1.bf16.msra.mxu0 0
      %744 = vmatprep.subr.bf16.mxu0 0
      %745 = vmatpush1.bf16.msra.mxu0 0
      %746 = vmatprep.subr.bf16.mxu0 0
      %747 = vmatpush1.bf16.msra.mxu0 0
      %748 = vmatprep.subr.bf16.mxu0 0
      %749 = vmatpush1.bf16.msra.mxu0 0
      %750 = vmatprep.subr.bf16.mxu0 0
      %751 = vmatpush1.bf16.msra.mxu0 0
      %752 = vmatprep.subr.bf16.mxu0 0
      %753 = vmatpush1.bf16.msra.mxu0 0
      %754 = vmatprep.subr.bf16.mxu0 0
      %755 = vmatpush1.bf16.msra.mxu0 0
      %756 = vmatprep.subr.bf16.mxu0 0
      %757 = vmatpush1.bf16.msra.mxu0 0
      %758 = vmatprep.subr.bf16.mxu0 0
      %759 = vmatpush1.bf16.msra.mxu0 0
      %760 = vmatprep.subr.bf16.mxu0 0
      %761 = vmatpush1.bf16.msra.mxu0 0
      %762 = vmatprep.subr.bf16.mxu0 0
      %763 = vmatpush1.bf16.msra.mxu0 0
      %764 = vmatprep.subr.bf16.mxu0 0
      %765 = vmatpush1.bf16.msra.mxu0 0
      %766 = vmatprep.mubr.bf16.mxu0 0
      %767 = vmatmul.mubr.bf16.gmra.mrb[0].mxu0 %v729
      %v768 = vpop.f32.mrb[0].mxu0
      %v769 = vadd.f32 %v726, %v768
      %v770 = vpop.f32.mrb[0].mxu0
      %v771 = vpop.f32.mrb[0].mxu0
      %v772 = vadd.f32 %v726, %v771
      %v773 = vpop.f32.mrb[0].mxu0
      %774 = vdwg.mxu0
      %vm775 = vcmask 15360
      %v776 = vsel %vm775, %v769, -inf
      %777 = vmax.xlane.f32.xlu0 %v776
      %v778 = vpop.xlane.xlu0 %777
      %v779 = vsel %vm775, %v772, -inf
      %780 = vmax.xlane.f32.xlu0 %v779
      %v781 = vpop.xlane.xlu0 %780
      %v782 = vsub.f32 %v769, %v778
      %v783 = vsub.f32 %v772, %v781
      %v784 = vmul.f32 %v782, 1.442695
      %v785 = vpow.pop %v784
      %v786 = vmul.f32 %v783, 1.442695
      %v787 = vpow.pop %v786
      %v788 = vsel %vm775, %v785, 0.0
      %789 = vadd.xlane.f32.xlu0 %v788
      %v790 = vpop.xlane.xlu0 %789
      %v791 = vsel %vm775, %v787, 0.0
      %792 = vadd.xlane.f32.xlu0 %v791
      %v793 = vpop.xlane.xlu0 %792
      %v794 = vrcp.pop %v790
      %v795 = vrcp.pop %v793
      %v796 = vmul.f32 %v785, %v794
      %v797 = vmul.f32 %v787, %v795
      %v798 = vmax.f32 %v432, %v525
      %v799 = vmax.f32 %v435, %v528
      %v800 = vmax.f32 %v798, %v618
      %v801 = vmax.f32 %v799, %v621
      %v802 = vmax.f32 %v800, %v711
      %v803 = vmax.f32 %v801, %v714
      %v804 = vsub.f32 %v432, %v802
      %v805 = vsub.f32 %v435, %v803
      %v806 = vmul.f32 %v804, 1.442695
      %v807 = vpow.pop %v806
      %v808 = vmul.f32 %v805, 1.442695
      %v809 = vpow.pop %v808
      %v810 = vsub.f32 %v525, %v802
      %v811 = vsub.f32 %v528, %v803
      %v812 = vmul.f32 %v810, 1.442695
      %v813 = vpow.pop %v812
      %v814 = vmul.f32 %v811, 1.442695
      %v815 = vpow.pop %v814
      %v816 = vsub.f32 %v618, %v802
      %v817 = vsub.f32 %v621, %v803
      %v818 = vmul.f32 %v816, 1.442695
      %v819 = vpow.pop %v818
      %v820 = vmul.f32 %v817, 1.442695
      %v821 = vpow.pop %v820
      %v822 = vsub.f32 %v711, %v802
      %v823 = vsub.f32 %v714, %v803
      %v824 = vmul.f32 %v822, 1.442695
      %v825 = vpow.pop %v824
      %v826 = vmul.f32 %v823, 1.442695
      %v827 = vpow.pop %v826
      %v828 = vadd.f32 %v807, %v813
      %v829 = vadd.f32 %v809, %v815
      %v830 = vadd.f32 %v828, %v819
      %v831 = vadd.f32 %v829, %v821
      %v832 = vadd.f32 %v830, %v825
      %v833 = vadd.f32 %v831, %v827
      %v834 = vrcp.pop %v832
      %v835 = vrcp.pop %v833
      %v836 = vmul.f32 %v807, %v834
      %v837 = vmul.f32 %v809, %v835
      %839 = vset.pattern.permute.xlu0 0
      %840 = vperm.xlu0 %839, %v836
      %v841 = vpop.permute.xlu0 %840
      %844 = vset.pattern.permute.xlu0 0
      %845 = vperm.xlu0 %844, %v837
      %v846 = vpop.permute.xlu0 %845
      %v848 = vmul.f32 %v841, %v382
      %v849 = vmul.f32 %v846, %v385
      %v850 = vmul.f32 %v813, %v834
      %v851 = vmul.f32 %v815, %v835
      %853 = vset.pattern.permute.xlu0 0
      %854 = vperm.xlu0 %853, %v850
      %v855 = vpop.permute.xlu0 %854
      %858 = vset.pattern.permute.xlu0 0
      %859 = vperm.xlu0 %858, %v851
      %v860 = vpop.permute.xlu0 %859
      %v862 = vmul.f32 %v855, %v480
      %v863 = vmul.f32 %v860, %v483
      %v864 = vadd.f32 %v848, %v862
      %v865 = vadd.f32 %v849, %v863
      %v866 = vmul.f32 %v819, %v834
      %v867 = vmul.f32 %v821, %v835
      %869 = vset.pattern.permute.xlu0 0
      %870 = vperm.xlu0 %869, %v866
      %v871 = vpop.permute.xlu0 %870
      %874 = vset.pattern.permute.xlu0 0
      %875 = vperm.xlu0 %874, %v867
      %v876 = vpop.permute.xlu0 %875
      %v878 = vmul.f32 %v871, %v573
      %v879 = vmul.f32 %v876, %v576
      %v880 = vadd.f32 %v864, %v878
      %v881 = vadd.f32 %v865, %v879
      %v882 = vmul.f32 %v825, %v834
      %v883 = vmul.f32 %v827, %v835
      %885 = vset.pattern.permute.xlu0 0
      %886 = vperm.xlu0 %885, %v882
      %v887 = vpop.permute.xlu0 %886
      %890 = vset.pattern.permute.xlu0 0
      %891 = vperm.xlu0 %890, %v883
      %v892 = vpop.permute.xlu0 %891
      %v894 = vmul.f32 %v887, %v666
      %v895 = vmul.f32 %v892, %v669
      %v896 = vadd.f32 %v880, %v894
      %v897 = vadd.f32 %v881, %v895
      %v898 = vpack.c.bf16 %v897, %v896
      %v899 = vld [vmem:[%s6] sm:$0xf]
      %v900 = vld [vmem:[%s7] sm:$0x1]
      %v901 = vlaneseq
      %v902 = vshrl.u32 %v901, 7
      %v903 = vsub.s32 0, %v902
      %v904 = vrot.slane %v900, %v903
      %v906 = vsel %vm389, %v898, 0
      %v909 = vsel %vm393, %v899, 0
      %911 = vmatprep.subr.bf16.mxu0 0
      %912 = vmatpush1.bf16.msra.mxu0 %v909
      %913 = vmatprep.subr.bf16.mxu0 0
      %914 = vmatpush1.bf16.msra.mxu0 0
      %915 = vmatprep.subr.bf16.mxu0 0
      %916 = vmatpush1.bf16.msra.mxu0 0
      %917 = vmatprep.subr.bf16.mxu0 0
      %918 = vmatpush1.bf16.msra.mxu0 0
      %919 = vmatprep.subr.bf16.mxu0 0
      %920 = vmatpush1.bf16.msra.mxu0 0
      %921 = vmatprep.subr.bf16.mxu0 0
      %922 = vmatpush1.bf16.msra.mxu0 0
      %923 = vmatprep.subr.bf16.mxu0 0
      %924 = vmatpush1.bf16.msra.mxu0 0
      %925 = vmatprep.subr.bf16.mxu0 0
      %926 = vmatpush1.bf16.msra.mxu0 0
      %927 = vmatprep.subr.bf16.mxu0 0
      %928 = vmatpush1.bf16.msra.mxu0 0
      %929 = vmatprep.subr.bf16.mxu0 0
      %930 = vmatpush1.bf16.msra.mxu0 0
      %931 = vmatprep.subr.bf16.mxu0 0
      %932 = vmatpush1.bf16.msra.mxu0 0
      %933 = vmatprep.subr.bf16.mxu0 0
      %934 = vmatpush1.bf16.msra.mxu0 0
      %935 = vmatprep.subr.bf16.mxu0 0
      %936 = vmatpush1.bf16.msra.mxu0 0
      %937 = vmatprep.subr.bf16.mxu0 0
      %938 = vmatpush1.bf16.msra.mxu0 0
      %939 = vmatprep.subr.bf16.mxu0 0
      %940 = vmatpush1.bf16.msra.mxu0 0
      %941 = vmatprep.subr.bf16.mxu0 0
      %942 = vmatpush1.bf16.msra.mxu0 0
      %943 = vmatprep.mubr.bf16.mxu0 0
      %944 = vmatmul.mubr.bf16.gmra.mrb[0].mxu0 %v906
      %v945 = vpop.f32.mrb[0].mxu0
      %v946 = vadd.f32 %v904, %v945
      %v947 = vpop.f32.mrb[0].mxu0
      %v948 = vpop.f32.mrb[0].mxu0
      %v949 = vadd.f32 %v904, %v948
      %v950 = vpop.f32.mrb[0].mxu0
      %951 = vdwg.mxu0
      %953 = vset.pattern.permute.xlu0 0
      %954 = vperm.xlu0 %953, %v796
      %v955 = vpop.permute.xlu0 %954
      %958 = vset.pattern.permute.xlu0 0
      %959 = vperm.xlu0 %958, %v797
      %v960 = vpop.permute.xlu0 %959
      %v962 = vmul.f32 %v955, %v946
      %v963 = vmul.f32 %v960, %v949
      %v964 = vadd.f32 %v962, 0.0
      %v965 = vadd.f32 %v963, 0.0
      %966 = vset.pattern.permute.xlu0 1
      %967 = vperm.xlu0 %966, %v836
      %v968 = vpop.permute.xlu0 %967
      %970 = vset.pattern.permute.xlu0 1
      %971 = vperm.xlu0 %970, %v837
      %v972 = vpop.permute.xlu0 %971
      %v974 = vmul.f32 %v968, %v382
      %v975 = vmul.f32 %v972, %v385
      %976 = vset.pattern.permute.xlu0 1
      %977 = vperm.xlu0 %976, %v850
      %v978 = vpop.permute.xlu0 %977
      %980 = vset.pattern.permute.xlu0 1
      %981 = vperm.xlu0 %980, %v851
      %v982 = vpop.permute.xlu0 %981
      %v984 = vmul.f32 %v978, %v480
      %v985 = vmul.f32 %v982, %v483
      %v986 = vadd.f32 %v974, %v984
      %v987 = vadd.f32 %v975, %v985
      %988 = vset.pattern.permute.xlu0 1
      %989 = vperm.xlu0 %988, %v866
      %v990 = vpop.permute.xlu0 %989
      %992 = vset.pattern.permute.xlu0 1
      %993 = vperm.xlu0 %992, %v867
      %v994 = vpop.permute.xlu0 %993
      %v996 = vmul.f32 %v990, %v573
      %v997 = vmul.f32 %v994, %v576
      %v998 = vadd.f32 %v986, %v996
      %v999 = vadd.f32 %v987, %v997
      %1000 = vset.pattern.permute.xlu0 1
      %1001 = vperm.xlu0 %1000, %v882
      %v1002 = vpop.permute.xlu0 %1001
      %1004 = vset.pattern.permute.xlu0 1
      %1005 = vperm.xlu0 %1004, %v883
      %v1006 = vpop.permute.xlu0 %1005
      %v1008 = vmul.f32 %v1002, %v666
      %v1009 = vmul.f32 %v1006, %v669
      %v1010 = vadd.f32 %v998, %v1008
      %v1011 = vadd.f32 %v999, %v1009
      %v1012 = vpack.c.bf16 %v1011, %v1010
      %s1013 = scalar_lea.vmem %s6, 4
      %v1014 = vld [vmem:[%s1013] sm:$0xf]
      %v1015 = vld [vmem:[%s7 + $0x1] sm:$0x1]
      %v1016 = vlaneseq
      %v1017 = vshrl.u32 %v1016, 7
      %v1018 = vsub.s32 0, %v1017
      %v1019 = vrot.slane %v1015, %v1018
      %v1021 = vsel %vm389, %v1012, 0
      %v1024 = vsel %vm393, %v1014, 0
      %1026 = vmatprep.subr.bf16.mxu0 0
      %1027 = vmatpush1.bf16.msra.mxu0 %v1024
      %1028 = vmatprep.subr.bf16.mxu0 0
      %1029 = vmatpush1.bf16.msra.mxu0 0
      %1030 = vmatprep.subr.bf16.mxu0 0
      %1031 = vmatpush1.bf16.msra.mxu0 0
      %1032 = vmatprep.subr.bf16.mxu0 0
      %1033 = vmatpush1.bf16.msra.mxu0 0
      %1034 = vmatprep.subr.bf16.mxu0 0
      %1035 = vmatpush1.bf16.msra.mxu0 0
      %1036 = vmatprep.subr.bf16.mxu0 0
      %1037 = vmatpush1.bf16.msra.mxu0 0
      %1038 = vmatprep.subr.bf16.mxu0 0
      %1039 = vmatpush1.bf16.msra.mxu0 0
      %1040 = vmatprep.subr.bf16.mxu0 0
      %1041 = vmatpush1.bf16.msra.mxu0 0
      %1042 = vmatprep.subr.bf16.mxu0 0
      %1043 = vmatpush1.bf16.msra.mxu0 0
      %1044 = vmatprep.subr.bf16.mxu0 0
      %1045 = vmatpush1.bf16.msra.mxu0 0
      %1046 = vmatprep.subr.bf16.mxu0 0
      %1047 = vmatpush1.bf16.msra.mxu0 0
      %1048 = vmatprep.subr.bf16.mxu0 0
      %1049 = vmatpush1.bf16.msra.mxu0 0
      %1050 = vmatprep.subr.bf16.mxu0 0
      %1051 = vmatpush1.bf16.msra.mxu0 0
      %1052 = vmatprep.subr.bf16.mxu0 0
      %1053 = vmatpush1.bf16.msra.mxu0 0
      %1054 = vmatprep.subr.bf16.mxu0 0
      %1055 = vmatpush1.bf16.msra.mxu0 0
      %1056 = vmatprep.subr.bf16.mxu0 0
      %1057 = vmatpush1.bf16.msra.mxu0 0
      %1058 = vmatprep.mubr.bf16.mxu0 0
      %1059 = vmatmul.mubr.bf16.gmra.mrb[0].mxu0 %v1021
      %v1060 = vpop.f32.mrb[0].mxu0
      %v1061 = vadd.f32 %v1019, %v1060
      %v1062 = vpop.f32.mrb[0].mxu0
      %v1063 = vpop.f32.mrb[0].mxu0
      %v1064 = vadd.f32 %v1019, %v1063
      %v1065 = vpop.f32.mrb[0].mxu0
      %1066 = vdwg.mxu0
      %1067 = vset.pattern.permute.xlu0 1
      %1068 = vperm.xlu0 %1067, %v796
      %v1069 = vpop.permute.xlu0 %1068
      %1071 = vset.pattern.permute.xlu0 1
      %1072 = vperm.xlu0 %1071, %v797
      %v1073 = vpop.permute.xlu0 %1072
      %v1075 = vmul.f32 %v1069, %v1061
      %v1076 = vmul.f32 %v1073, %v1064
      %v1077 = vadd.f32 %v964, %v1075
      %v1078 = vadd.f32 %v965, %v1076
      %v1079 = vxor.u32 %v1077, 2147483648
      %v1080 = vxor.u32 %v1078, 2147483648
      %v1081 = vmul.f32 %v1079, 1.442695
      %v1082 = vpow.pop %v1081
      %v1083 = vmul.f32 %v1080, 1.442695
      %v1084 = vpow.pop %v1083
      %v1085 = vadd.f32 %v1082, 1.0
      %v1086 = vadd.f32 %v1084, 1.0
      %v1087 = vrcp.pop %v1085
      %v1088 = vmul.f32 1.0, %v1087
      %v1089 = vrcp.pop %v1086
      %v1090 = vmul.f32 1.0, %v1089
      %1091 = vst.msk [vmem:[%s307] sm:$0xff] %vm389, %v1088
      %1092 = vst.msk [vmem:[%s307 + $0x8] sm:$0xff] %vm389, %v1090
      %s1093 = smul.u32 2, %s19
      %p1094 = scmp.lt.s32.totalorder %s1093, 3
      %s1095 = scalar_select %p1094, %s1093, 3
      %s1096 = smul.addr %s1095, 8
      %s1097 = scalar_lea.vmem %s8, %s1096
      // Predicated region
      $region53: #{tpu_custom_call.1} parent=51 // pred_check
        %p1098 = pneg %p210
      $region54: #{tpu_custom_call.1} parent=51 // pred_check_branch
        %1100 = sbr.rel (%p1098) target = $region56
      $region55: #{tpu_custom_call.1} parent=51 // pred_region
        %s1101 = smul.u32 2, %s19
      $region56: #{tpu_custom_call.1} parent=51 // pred_fallthru
        _
    $region52: #{tpu_custom_call.1} parent=5 // pred_fallthru
      _
    %p1102 = scmp.le.s32.totalorder 2, %s14
    // Predicated region
    $region57: #{tpu_custom_call.1} parent=5 // pred_check
      %p1103 = pneg %p1102
    $region58: #{tpu_custom_call.1} parent=5 // pred_check_branch
      %1105 = sbr.rel (%p1103) target = $region60
    $region59: #{tpu_custom_call.1} parent=5 // pred_region
      %s1106 = ssub.s32 %s14, 2
      // Predicated region
      $region61: #{tpu_custom_call.1} parent=59 // pred_check
        %p1107 = pneg %p216
      $region62: #{tpu_custom_call.1} parent=59 // pred_check_branch
        %1109 = sbr.rel (%p1107) target = $region64
      $region63: #{tpu_custom_call.1} parent=59 // pred_region
        %s1110 = smul.u32 2, %s20
        %p1111 = scmp.lt.s32.totalorder %s1110, 3
        %s1112 = scalar_select %p1111, %s1110, 3
        %s1113 = smul.addr %s1112, 8
        %s1114 = scalar_lea.vmem %s8, %s1113
      $region64: #{tpu_custom_call.1} parent=59 // pred_fallthru
        _
    $region60: #{tpu_custom_call.1} parent=5 // pred_fallthru
      _
  $region6: #{tpu_custom_call.1} parent=0 // loop_footer
    %s18 = sadd.s32 1, %s14
  $region7: #{tpu_custom_call.1} parent=0 // loop_footer_branch
    %13 = sbr.rel target = $region3
  $region8: #{tpu_custom_call.1} parent=0 // loop_exit
    _

// kernel: tpu_custom_call.1
$region0: #{tpu_custom_call.1}
  #allocation0 [shape = 'u32[]', space=smem, size = 0x4, offset = 0x4, fixed_abs, tag = 'smem constant byte address 0x4 - core index']
  #allocation1 [shape = 'u32[144,128]{1,0:T(1,128)}', space=vmem, size = 0x12000, scoped, tag = 'internal scratch']
  %s0 = inlined_call_operand.vmem [shape: bf16[32,128], index: 0, kind: input, shape index: {}]
  %s1 = inlined_call_operand.vmem [shape: bf16[32,8], index: 1, kind: input, shape index: {}]
  %s2 = inlined_call_operand.vmem [shape: f32[1,8], index: 2, kind: input, shape index: {}]
  %s3 = inlined_call_operand.vmem [shape: bf16[8,2], index: 3, kind: input, shape index: {}]
  %s4 = inlined_call_operand.vmem [shape: bf16[8,2], index: 4, kind: input, shape index: {}]
  %s5 = inlined_call_operand.vmem [shape: f32[1,2], index: 5, kind: input, shape index: {}]
  %s6 = inlined_call_operand.vmem [shape: bf16[2,8,8], index: 6, kind: input, shape index: {}]
  %s7 = inlined_call_operand.vmem [shape: f32[2,8], index: 7, kind: input, shape index: {}]
  %s8 = inlined_call_operand.vmem [shape: f32[32,8], index: 8, kind: output, shape index: {}]
  %s9 = sld [smem:[#allocation0]]
  $region65: #{tpu_custom_call.1} parent=0
    _
  %s11 = ssub.s32 1, %s9
  %s12 = scalar_select 0, %s11, %s9
  loop: start=0, step=1, limit=4
  $region2: #{tpu_custom_call.1} parent=0 // loop_pre_header
    _
  $region3: #{tpu_custom_call.1} parent=0 // loop_header
    %s14 = sphi 0, %s18
    %p15 = scmp.ge.s32.totalorder %s14, 4
    %s24 = sphi 0, %s26
    %s27 = sphi 0, %s24
    %s28 = sphi 0, %s27
    %s44 = sphi 0, %s28
    %s48 = sphi 0, %s48
    %s50 = sphi 0, %s48
    %s51 = sphi 0, %s50
    %s65 = sphi 0, %s51
    %s69 = sphi 0, %s69
    %s71 = sphi 0, %s69
    %s72 = sphi 0, %s71
    %s86 = sphi 0, %s72
    %s90 = sphi 0, %s90
    %s92 = sphi 0, %s90
    %s93 = sphi 0, %s92
    %s107 = sphi 0, %s93
    %s111 = sphi 0, %s111
    %s113 = sphi 0, %s111
    %s114 = sphi 0, %s113
    %s128 = sphi 0, %s114
    %s132 = sphi 0, %s132
    %s134 = sphi 0, %s132
    %s135 = sphi 0, %s134
    %s149 = sphi 0, %s135
    %s153 = sphi 0, %s153
    %s155 = sphi 0, %s153
    %s156 = sphi 0, %s155
    %s170 = sphi 0, %s156
    %s174 = sphi 0, %s174
    %s176 = sphi 0, %s174
    %s177 = sphi 0, %s176
    %s191 = sphi 0, %s177
    %s197 = sphi 0, %s199
    %s200 = sphi 0, %s197
    %s201 = sphi 0, %s200
    %s217 = sphi 0, %s201
  $region4: #{tpu_custom_call.1} parent=0 // loop_header_branch
    %17 = sbr.rel (%p15) target = $region8
  $region5: #{tpu_custom_call.1} parent=0 // loop_body
    %s19 = ssub.s32 %s14, 1
    %s20 = ssub.s32 %s14, 2
    %s21 = sadd.s32 %s14, 1
    %s22 = ssub.s32 %s14, %s21
    %p23 = scmp.eq.s32.totalorder %s22, 0
    %s25 = sadd.s32 %s24, 1
    %s26 = scalar_select %p23, %s24, %s25
    %p29 = pneg %p23
    %p30 = scmp.eq.s32.totalorder %s14, 1
    %p31 = por %p29, %p30
    %p32 = scmp.ne.s32.totalorder %s24, %s27
    %p33 = scmp.eq.s32.totalorder %s14, 0
    %p34 = por %p32, %p33
    %p35 = scmp.ne.s32.totalorder %s24, %s27
    %p36 = scmp.eq.s32.totalorder %s19, 1
    %p37 = por %p35, %p36
    %p38 = scmp.ne.s32.totalorder %s27, %s28
    %p39 = scmp.eq.s32.totalorder %s19, 0
    %p40 = por %p38, %p39
    %p41 = scmp.ne.s32.totalorder %s27, %s28
    %p42 = scmp.eq.s32.totalorder %s20, 1
    %p43 = por %p41, %p42
    %p45 = scmp.ne.s32.totalorder %s28, %s44
    %p46 = scmp.eq.s32.totalorder %s20, 0
    %p47 = por %p45, %p46
    %s49 = sadd.s32 %s48, 1
    %p52 = scmp.eq.s32.totalorder %s14, 1
    %p53 = scmp.ne.s32.totalorder %s48, %s50
    %p54 = scmp.eq.s32.totalorder %s14, 0
    %p55 = por %p53, %p54
    %p56 = scmp.ne.s32.totalorder %s48, %s50
    %p57 = scmp.eq.s32.totalorder %s19, 1
    %p58 = por %p56, %p57
    %p59 = scmp.ne.s32.totalorder %s50, %s51
    %p60 = scmp.eq.s32.totalorder %s19, 0
    %p61 = por %p59, %p60
    %p62 = scmp.ne.s32.totalorder %s50, %s51
    %p63 = scmp.eq.s32.totalorder %s20, 1
    %p64 = por %p62, %p63
    %p66 = scmp.ne.s32.totalorder %s51, %s65
    %p67 = scmp.eq.s32.totalorder %s20, 0
    %p68 = por %p66, %p67
    %s70 = sadd.s32 %s69, 1
    %p73 = scmp.eq.s32.totalorder %s14, 1
    %p74 = scmp.ne.s32.totalorder %s69, %s71
    %p75 = scmp.eq.s32.totalorder %s14, 0
    %p76 = por %p74, %p75
    %p77 = scmp.ne.s32.totalorder %s69, %s71
    %p78 = scmp.eq.s32.totalorder %s19, 1
    %p79 = por %p77, %p78
    %p80 = scmp.ne.s32.totalorder %s71, %s72
    %p81 = scmp.eq.s32.totalorder %s19, 0
    %p82 = por %p80, %p81
    %p83 = scmp.ne.s32.totalorder %s71, %s72
    %p84 = scmp.eq.s32.totalorder %s20, 1
    %p85 = por %p83, %p84
    %p87 = scmp.ne.s32.totalorder %s72, %s86
    %p88 = scmp.eq.s32.totalorder %s20, 0
    %p89 = por %p87, %p88
    %s91 = sadd.s32 %s90, 1
    %p94 = scmp.eq.s32.totalorder %s14, 1
    %p95 = scmp.ne.s32.totalorder %s90, %s92
    %p96 = scmp.eq.s32.totalorder %s14, 0
    %p97 = por %p95, %p96
    %p98 = scmp.ne.s32.totalorder %s90, %s92
    %p99 = scmp.eq.s32.totalorder %s19, 1
    %p100 = por %p98, %p99
    %p101 = scmp.ne.s32.totalorder %s92, %s93
    %p102 = scmp.eq.s32.totalorder %s19, 0
    %p103 = por %p101, %p102
    %p104 = scmp.ne.s32.totalorder %s92, %s93
    %p105 = scmp.eq.s32.totalorder %s20, 1
    %p106 = por %p104, %p105
    %p108 = scmp.ne.s32.totalorder %s93, %s107
    %p109 = scmp.eq.s32.totalorder %s20, 0
    %p110 = por %p108, %p109
    %s112 = sadd.s32 %s111, 1
    %p115 = scmp.eq.s32.totalorder %s14, 1
    %p116 = scmp.ne.s32.totalorder %s111, %s113
    %p117 = scmp.eq.s32.totalorder %s14, 0
    %p118 = por %p116, %p117
    %p119 = scmp.ne.s32.totalorder %s111, %s113
    %p120 = scmp.eq.s32.totalorder %s19, 1
    %p121 = por %p119, %p120
    %p122 = scmp.ne.s32.totalorder %s113, %s114
    %p123 = scmp.eq.s32.totalorder %s19, 0
    %p124 = por %p122, %p123
    %p125 = scmp.ne.s32.totalorder %s113, %s114
    %p126 = scmp.eq.s32.totalorder %s20, 1
    %p127 = por %p125, %p126
    %p129 = scmp.ne.s32.totalorder %s114, %s128
    %p130 = scmp.eq.s32.totalorder %s20, 0
    %p131 = por %p129, %p130
    %s133 = sadd.s32 %s132, 1
    %p136 = scmp.eq.s32.totalorder %s14, 1
    %p137 = scmp.ne.s32.totalorder %s132, %s134
    %p138 = scmp.eq.s32.totalorder %s14, 0
    %p139 = por %p137, %p138
    %p140 = scmp.ne.s32.totalorder %s132, %s134
    %p141 = scmp.eq.s32.totalorder %s19, 1
    %p142 = por %p140, %p141
    %p143 = scmp.ne.s32.totalorder %s134, %s135
    %p144 = scmp.eq.s32.totalorder %s19, 0
    %p145 = por %p143, %p144
    %p146 = scmp.ne.s32.totalorder %s134, %s135
    %p147 = scmp.eq.s32.totalorder %s20, 1
    %p148 = por %p146, %p147
    %p150 = scmp.ne.s32.totalorder %s135, %s149
    %p151 = scmp.eq.s32.totalorder %s20, 0
    %p152 = por %p150, %p151
    %s154 = sadd.s32 %s153, 1
    %p157 = scmp.eq.s32.totalorder %s14, 1
    %p158 = scmp.ne.s32.totalorder %s153, %s155
    %p159 = scmp.eq.s32.totalorder %s14, 0
    %p160 = por %p158, %p159
    %p161 = scmp.ne.s32.totalorder %s153, %s155
    %p162 = scmp.eq.s32.totalorder %s19, 1
    %p163 = por %p161, %p162
    %p164 = scmp.ne.s32.totalorder %s155, %s156
    %p165 = scmp.eq.s32.totalorder %s19, 0
    %p166 = por %p164, %p165
    %p167 = scmp.ne.s32.totalorder %s155, %s156
    %p168 = scmp.eq.s32.totalorder %s20, 1
    %p169 = por %p167, %p168
    %p171 = scmp.ne.s32.totalorder %s156, %s170
    %p172 = scmp.eq.s32.totalorder %s20, 0
    %p173 = por %p171, %p172
    %s175 = sadd.s32 %s174, 1
    %p178 = scmp.eq.s32.totalorder %s14, 1
    %p179 = scmp.ne.s32.totalorder %s174, %s176
    %p180 = scmp.eq.s32.totalorder %s14, 0
    %p181 = por %p179, %p180
    %p182 = scmp.ne.s32.totalorder %s174, %s176
    %p183 = scmp.eq.s32.totalorder %s19, 1
    %p184 = por %p182, %p183
    %p185 = scmp.ne.s32.totalorder %s176, %s177
    %p186 = scmp.eq.s32.totalorder %s19, 0
    %p187 = por %p185, %p186
    %p188 = scmp.ne.s32.totalorder %s176, %s177
    %p189 = scmp.eq.s32.totalorder %s20, 1
    %p190 = por %p188, %p189
    %p192 = scmp.ne.s32.totalorder %s177, %s191
    %p193 = scmp.eq.s32.totalorder %s20, 0
    %p194 = por %p192, %p193
    %s195 = ssub.s32 %s14, %s21
    %p196 = scmp.eq.s32.totalorder %s195, 0
    %s198 = sadd.s32 %s197, 1
    %s199 = scalar_select %p196, %s197, %s198
    %p202 = pneg %p196
    %p203 = scmp.eq.s32.totalorder %s14, 1
    %p204 = por %p202, %p203
    %p205 = scmp.ne.s32.totalorder %s197, %s200
    %p206 = scmp.eq.s32.totalorder %s14, 0
    %p207 = por %p205, %p206
    %p208 = scmp.ne.s32.totalorder %s197, %s200
    %p209 = scmp.eq.s32.totalorder %s19, 1
    %p210 = por %p208, %p209
    %p211 = scmp.ne.s32.totalorder %s200, %s201
    %p212 = scmp.eq.s32.totalorder %s19, 0
    %p213 = por %p211, %p212
    %p214 = scmp.ne.s32.totalorder %s200, %s201
    %p215 = scmp.eq.s32.totalorder %s20, 1
    %p216 = por %p214, %p215
    %p218 = scmp.ne.s32.totalorder %s201, %s217
    %p219 = scmp.eq.s32.totalorder %s20, 0
    %p220 = por %p218, %p219
    %p221 = scmp.le.s32.totalorder 1, %s14
    %p222 = scmp.lt.s32.totalorder %s14, 3
    %p223 = pnand %p221, %p222
    %p224 = pneg %p223
    // Predicated region
    $region9: #{tpu_custom_call.1} parent=5 // pred_check
      _
    $region10: #{tpu_custom_call.1} parent=5 // pred_check_branch
      %226 = sbr.rel (%p223) target = $region12
    $region11: #{tpu_custom_call.1} parent=5 // pred_region
      %s227 = ssub.s32 %s14, 1
      // Predicated region
      $region13: #{tpu_custom_call.1} parent=11 // pred_check
        %p228 = pneg %p61
      $region14: #{tpu_custom_call.1} parent=11 // pred_check_branch
        %230 = sbr.rel (%p228) target = $region16
      $region15: #{tpu_custom_call.1} parent=11 // pred_region
        _
      $region16: #{tpu_custom_call.1} parent=11 // pred_fallthru
        _
      // Predicated region
      $region17: #{tpu_custom_call.1} parent=11 // pred_check
        %p231 = pneg %p82
      $region18: #{tpu_custom_call.1} parent=11 // pred_check_branch
        %233 = sbr.rel (%p231) target = $region20
      $region19: #{tpu_custom_call.1} parent=11 // pred_region
        _
      $region20: #{tpu_custom_call.1} parent=11 // pred_fallthru
        _
      // Predicated region
      $region21: #{tpu_custom_call.1} parent=11 // pred_check
        %p234 = pneg %p103
      $region22: #{tpu_custom_call.1} parent=11 // pred_check_branch
        %236 = sbr.rel (%p234) target = $region24
      $region23: #{tpu_custom_call.1} parent=11 // pred_region
        _
      $region24: #{tpu_custom_call.1} parent=11 // pred_fallthru
        _
      // Predicated region
      $region25: #{tpu_custom_call.1} parent=11 // pred_check
        %p237 = pneg %p124
      $region26: #{tpu_custom_call.1} parent=11 // pred_check_branch
        %239 = sbr.rel (%p237) target = $region28
      $region27: #{tpu_custom_call.1} parent=11 // pred_region
        _
      $region28: #{tpu_custom_call.1} parent=11 // pred_fallthru
        _
      // Predicated region
      $region29: #{tpu_custom_call.1} parent=11 // pred_check
        %p240 = pneg %p145
      $region30: #{tpu_custom_call.1} parent=11 // pred_check_branch
        %242 = sbr.rel (%p240) target = $region32
      $region31: #{tpu_custom_call.1} parent=11 // pred_region
        _
      $region32: #{tpu_custom_call.1} parent=11 // pred_fallthru
        _
      // Predicated region
      $region33: #{tpu_custom_call.1} parent=11 // pred_check
        %p243 = pneg %p166
      $region34: #{tpu_custom_call.1} parent=11 // pred_check_branch
        %245 = sbr.rel (%p243) target = $region36
      $region35: #{tpu_custom_call.1} parent=11 // pred_region
        _
      $region36: #{tpu_custom_call.1} parent=11 // pred_fallthru
        _
      // Predicated region
      $region37: #{tpu_custom_call.1} parent=11 // pred_check
        %p246 = pneg %p187
      $region38: #{tpu_custom_call.1} parent=11 // pred_check_branch
        %248 = sbr.rel (%p246) target = $region40
      $region39: #{tpu_custom_call.1} parent=11 // pred_region
        _
      $region40: #{tpu_custom_call.1} parent=11 // pred_fallthru
        _
    $region12: #{tpu_custom_call.1} parent=5 // pred_fallthru
      _
    %p249 = scmp.lt.s32.totalorder %s14, 2
    // Predicated region
    $region41: #{tpu_custom_call.1} parent=5 // pred_check
      %p250 = pneg %p249
    $region42: #{tpu_custom_call.1} parent=5 // pred_check_branch
      %252 = sbr.rel (%p250) target = $region44
    $region43: #{tpu_custom_call.1} parent=5 // pred_region
      // Predicated region
      $region45: #{tpu_custom_call.1} parent=43 // pred_check
        %p253 = pneg %p34
      $region46: #{tpu_custom_call.1} parent=43 // pred_check_branch
        %255 = sbr.rel (%p253) target = $region48
      $region47: #{tpu_custom_call.1} parent=43 // pred_region
        %s256 = smul.u32 2, %s14
        %p257 = scmp.lt.s32.totalorder %s256, 3
        %s258 = scalar_select %p257, %s256, 3
        %s259 = smul.addr %s258, 4
        %s260 = scalar_lea.vmem %s0, %s259
        %s261 = smul.u32 2, %s14
      $region48: #{tpu_custom_call.1} parent=43 // pred_fallthru
        _
    $region44: #{tpu_custom_call.1} parent=5 // pred_fallthru
      _
    %p262 = scmp.le.s32.totalorder 1, %s14
    %p263 = scmp.lt.s32.totalorder %s14, 3
    %p264 = pnand %p262, %p263
    %p265 = pneg %p264
    // Predicated region
    $region49: #{tpu_custom_call.1} parent=5 // pred_check
      _
    $region50: #{tpu_custom_call.1} parent=5 // pred_check_branch
      %267 = sbr.rel (%p264) target = $region52
    $region51: #{tpu_custom_call.1} parent=5 // pred_region
      %s268 = ssub.s32 %s14, 1
      %s269 = smul.u32 2, %s19
      %p270 = scmp.lt.s32.totalorder %s269, 3
      %s271 = scalar_select %p270, %s269, 3
      %s272 = smul.addr %s271, 4
      %s273 = scalar_lea.vmem %s0, %s272
      %p274 = pneg %p40
      %p275 = pneg %p37
      %p276 = pneg %p61
      %p277 = pneg %p58
      %p278 = pneg %p82
      %p279 = pneg %p79
      %p280 = pneg %p103
      %p281 = pneg %p100
      %p282 = pneg %p124
      %p283 = pneg %p121
      %p284 = pneg %p145
      %p285 = pneg %p142
      %p286 = pneg %p166
      %p287 = pneg %p163
      %p288 = pneg %p187
      %p289 = pneg %p184
      %p290 = pneg %p213
      %p291 = pneg %p210
      %s292 = smul.u32 2, %s19
      %p293 = scmp.lt.s32.totalorder %s292, 3
      %s294 = scalar_select %p293, %s292, 3
      %s295 = smul.addr %s294, 8
      %s296 = scalar_lea.vmem %s8, %s295
      %s297 = smul.u32 2, %s19
      %p298 = scmp.lt.s32.totalorder %s297, 3
      %s299 = scalar_select %p298, %s297, 3
      %s300 = smul.addr %s299, 4
      %s301 = scalar_lea.vmem %s0, %s300
      %s302 = smul.u32 2, %s19
      %s303 = smul.u32 2, %s19
      %p304 = scmp.lt.s32.totalorder %s303, 3
      %s305 = scalar_select %p304, %s303, 3
      %s306 = smul.addr %s305, 8
      %s307 = scalar_lea.vmem %s8, %s306
      %s308 = smul.u32 2, %s19
      %v310 = vld [vmem:[%s301] sm:$0xf]
      %v311 = vld [vmem:[%s301 + $0x4] sm:$0xf]
      %v312 = vmax.bf16 %v310, 0
      %v313 = vmax.bf16 %v311, 0
      %v314 = vld [vmem:[%s1] sm:$0xf]
      %v315 = vld [vmem:[%s1 + $0x4] sm:$0xf]
      %v316 = vld [vmem:[%s1 + $0x8] sm:$0xf]
      %v317 = vld [vmem:[%s1 + $0xc] sm:$0xf]
      %v318 = vld [vmem:[%s2] sm:$0x1]
      %v319 = vld [vmem:[%s3] sm:$0xf]
      %v321 = vlaneseq
      %v322 = vshrl.u32 %v321, 7
      %v323 = vsub.s32 0, %v322
      %v324 = vrot.slane %v318, %v323
      %v328 = vunpack.c.l.b16 %v312
      %v329 = vunpack.c.l.b16 %v313
      %v330 = vpack.c.b16 %v329, %v328
      %v335 = vunpack.c.l.b16 %v314
      %v336 = vunpack.c.l.b16 %v315
      %v337 = vunpack.c.l.b16 %v316
      %v338 = vunpack.c.l.b16 %v317
      %v339 = vpack.c.b16 %v336, %v335
      %v340 = vpack.c.b16 %v338, %v337
      %vm343 = vcmask 261120
      %v345 = vsel %vm343, %v330, 0
      %347 = vmatprep.subr.bf16.mxu0 0
      %348 = vmatpush1.bf16.msra.mxu0 %v339
      %349 = vmatprep.subr.bf16.mxu0 0
      %350 = vmatpush1.bf16.msra.mxu0 %v340
      %351 = vmatprep.subr.bf16.mxu0 0
      %352 = vmatpush1.bf16.msra.mxu0 0
      %353 = vmatprep.subr.bf16.mxu0 0
      %354 = vmatpush1.bf16.msra.mxu0 0
      %355 = vmatprep.subr.bf16.mxu0 0
      %356 = vmatpush1.bf16.msra.mxu0 0
      %357 = vmatprep.subr.bf16.mxu0 0
      %358 = vmatpush1.bf16.msra.mxu0 0
      %359 = vmatprep.subr.bf16.mxu0 0
      %360 = vmatpush1.bf16.msra.mxu0 0
      %361 = vmatprep.subr.bf16.mxu0 0
      %362 = vmatpush1.bf16.msra.mxu0 0
      %363 = vmatprep.subr.bf16.mxu0 0
      %364 = vmatpush1.bf16.msra.mxu0 0
      %365 = vmatprep.subr.bf16.mxu0 0
      %366 = vmatpush1.bf16.msra.mxu0 0
      %367 = vmatprep.subr.bf16.mxu0 0
      %368 = vmatpush1.bf16.msra.mxu0 0
      %369 = vmatprep.subr.bf16.mxu0 0
      %370 = vmatpush1.bf16.msra.mxu0 0
      %371 = vmatprep.subr.bf16.mxu0 0
      %372 = vmatpush1.bf16.msra.mxu0 0
      %373 = vmatprep.subr.bf16.mxu0 0
      %374 = vmatpush1.bf16.msra.mxu0 0
      %375 = vmatprep.subr.bf16.mxu0 0
      %376 = vmatpush1.bf16.msra.mxu0 0
      %377 = vmatprep.subr.bf16.mxu0 0
      %378 = vmatpush1.bf16.msra.mxu0 0
      %379 = vmatprep.mubr.bf16.mxu0 0
      %380 = vmatmul.mubr.bf16.gmra.mrb[0].mxu0 %v345
      %v381 = vpop.f32.mrb[0].mxu0
      %v382 = vadd.f32 %v324, %v381
      %v383 = vpop.f32.mrb[0].mxu0
      %v384 = vpop.f32.mrb[0].mxu0
      %v385 = vadd.f32 %v324, %v384
      %v386 = vpop.f32.mrb[0].mxu0
      %387 = vdwg.mxu0
      %v388 = vpack.c.bf16 %v385, %v382
      %vm389 = vcmask 64512
      %v391 = vsel %vm389, %v388, 0
      %vm393 = vcmask 1043456
      %v395 = vsel %vm393, %v319, 0
      %397 = vmatprep.subr.bf16.mxu0 0
      %398 = vmatpush1.bf16.msra.mxu0 %v395
      %399 = vmatprep.subr.bf16.mxu0 0
      %400 = vmatpush1.bf16.msra.mxu0 0
      %401 = vmatprep.subr.bf16.mxu0 0
      %402 = vmatpush1.bf16.msra.mxu0 0
      %403 = vmatprep.subr.bf16.mxu0 0
      %404 = vmatpush1.bf16.msra.mxu0 0
      %405 = vmatprep.subr.bf16.mxu0 0
      %406 = vmatpush1.bf16.msra.mxu0 0
      %407 = vmatprep.subr.bf16.mxu0 0
      %408 = vmatpush1.bf16.msra.mxu0 0
      %409 = vmatprep.subr.bf16.mxu0 0
      %410 = vmatpush1.bf16.msra.mxu0 0
      %411 = vmatprep.subr.bf16.mxu0 0
      %412 = vmatpush1.bf16.msra.mxu0 0
      %413 = vmatprep.subr.bf16.mxu0 0
      %414 = vmatpush1.bf16.msra.mxu0 0
      %415 = vmatprep.subr.bf16.mxu0 0
      %416 = vmatpush1.bf16.msra.mxu0 0
      %417 = vmatprep.subr.bf16.mxu0 0
      %418 = vmatpush1.bf16.msra.mxu0 0
      %419 = vmatprep.subr.bf16.mxu0 0
      %420 = vmatpush1.bf16.msra.mxu0 0
      %421 = vmatprep.subr.bf16.mxu0 0
      %422 = vmatpush1.bf16.msra.mxu0 0
      %423 = vmatprep.subr.bf16.mxu0 0
      %424 = vmatpush1.bf16.msra.mxu0 0
      %425 = vmatprep.subr.bf16.mxu0 0
      %426 = vmatpush1.bf16.msra.mxu0 0
      %427 = vmatprep.subr.bf16.mxu0 0
      %428 = vmatpush1.bf16.msra.mxu0 0
      %429 = vmatprep.mubr.bf16.mxu0 0
      %430 = vmatmul.mubr.bf16.gmra.mrb[0].mxu0 %v391
      %v431 = vpop.f32.mrb[0].mxu0
      %v432 = vadd.f32 0.0, %v431
      %v433 = vpop.f32.mrb[0].mxu0
      %v434 = vpop.f32.mrb[0].mxu0
      %v435 = vadd.f32 0.0, %v434
      %v436 = vpop.f32.mrb[0].mxu0
      %437 = vdwg.mxu0
      %v438 = vadd.f32 %v382, 0.0
      %v439 = vadd.f32 %v385, 0.0
      %440 = vrot.lane.b32.xlu0 %v330, 96
      %v441 = vpop.permute.xlu0 %440
      %v443 = vsel %vm343, %v441, 0
      %445 = vmatprep.subr.bf16.mxu0 0
      %446 = vmatpush1.bf16.msra.mxu0 %v339
      %447 = vmatprep.subr.bf16.mxu0 0
      %448 = vmatpush1.bf16.msra.mxu0 %v340
      %449 = vmatprep.subr.bf16.mxu0 0
      %450 = vmatpush1.bf16.msra.mxu0 0
      %451 = vmatprep.subr.bf16.mxu0 0
      %452 = vmatpush1.bf16.msra.mxu0 0
      %453 = vmatprep.subr.bf16.mxu0 0
      %454 = vmatpush1.bf16.msra.mxu0 0
      %455 = vmatprep.subr.bf16.mxu0 0
      %456 = vmatpush1.bf16.msra.mxu0 0
      %457 = vmatprep.subr.bf16.mxu0 0
      %458 = vmatpush1.bf16.msra.mxu0 0
      %459 = vmatprep.subr.bf16.mxu0 0
      %460 = vmatpush1.bf16.msra.mxu0 0
      %461 = vmatprep.subr.bf16.mxu0 0
      %462 = vmatpush1.bf16.msra.mxu0 0
      %463 = vmatprep.subr.bf16.mxu0 0
      %464 = vmatpush1.bf16.msra.mxu0 0
      %465 = vmatprep.subr.bf16.mxu0 0
      %466 = vmatpush1.bf16.msra.mxu0 0
      %467 = vmatprep.subr.bf16.mxu0 0
      %468 = vmatpush1.bf16.msra.mxu0 0
      %469 = vmatprep.subr.bf16.mxu0 0
      %470 = vmatpush1.bf16.msra.mxu0 0
      %471 = vmatprep.subr.bf16.mxu0 0
      %472 = vmatpush1.bf16.msra.mxu0 0
      %473 = vmatprep.subr.bf16.mxu0 0
      %474 = vmatpush1.bf16.msra.mxu0 0
      %475 = vmatprep.subr.bf16.mxu0 0
      %476 = vmatpush1.bf16.msra.mxu0 0
      %477 = vmatprep.mubr.bf16.mxu0 0
      %478 = vmatmul.mubr.bf16.gmra.mrb[0].mxu0 %v443
      %v479 = vpop.f32.mrb[0].mxu0
      %v480 = vadd.f32 %v324, %v479
      %v481 = vpop.f32.mrb[0].mxu0
      %v482 = vpop.f32.mrb[0].mxu0
      %v483 = vadd.f32 %v324, %v482
      %v484 = vpop.f32.mrb[0].mxu0
      %485 = vdwg.mxu0
      %v486 = vpack.c.bf16 %v483, %v480
      %v488 = vsel %vm389, %v486, 0
      %490 = vmatprep.subr.bf16.mxu0 0
      %491 = vmatpush1.bf16.msra.mxu0 %v395
      %492 = vmatprep.subr.bf16.mxu0 0
      %493 = vmatpush1.bf16.msra.mxu0 0
      %494 = vmatprep.subr.bf16.mxu0 0
      %495 = vmatpush1.bf16.msra.mxu0 0
      %496 = vmatprep.subr.bf16.mxu0 0
      %497 = vmatpush1.bf16.msra.mxu0 0
      %498 = vmatprep.subr.bf16.mxu0 0
      %499 = vmatpush1.bf16.msra.mxu0 0
      %500 = vmatprep.subr.bf16.mxu0 0
      %501 = vmatpush1.bf16.msra.mxu0 0
      %502 = vmatprep.subr.bf16.mxu0 0
      %503 = vmatpush1.bf16.msra.mxu0 0
      %504 = vmatprep.subr.bf16.mxu0 0
      %505 = vmatpush1.bf16.msra.mxu0 0
      %506 = vmatprep.subr.bf16.mxu0 0
      %507 = vmatpush1.bf16.msra.mxu0 0
      %508 = vmatprep.subr.bf16.mxu0 0
      %509 = vmatpush1.bf16.msra.mxu0 0
      %510 = vmatprep.subr.bf16.mxu0 0
      %511 = vmatpush1.bf16.msra.mxu0 0
      %512 = vmatprep.subr.bf16.mxu0 0
      %513 = vmatpush1.bf16.msra.mxu0 0
      %514 = vmatprep.subr.bf16.mxu0 0
      %515 = vmatpush1.bf16.msra.mxu0 0
      %516 = vmatprep.subr.bf16.mxu0 0
      %517 = vmatpush1.bf16.msra.mxu0 0
      %518 = vmatprep.subr.bf16.mxu0 0
      %519 = vmatpush1.bf16.msra.mxu0 0
      %520 = vmatprep.subr.bf16.mxu0 0
      %521 = vmatpush1.bf16.msra.mxu0 0
      %522 = vmatprep.mubr.bf16.mxu0 0
      %523 = vmatmul.mubr.bf16.gmra.mrb[0].mxu0 %v488
      %v524 = vpop.f32.mrb[0].mxu0
      %v525 = vadd.f32 0.0, %v524
      %v526 = vpop.f32.mrb[0].mxu0
      %v527 = vpop.f32.mrb[0].mxu0
      %v528 = vadd.f32 0.0, %v527
      %v529 = vpop.f32.mrb[0].mxu0
      %530 = vdwg.mxu0
      %v531 = vadd.f32 %v438, %v480
      %v532 = vadd.f32 %v439, %v483
      %533 = vrot.lane.b32.xlu0 %v330, 64
      %v534 = vpop.permute.xlu0 %533
      %v536 = vsel %vm343, %v534, 0
      %538 = vmatprep.subr.bf16.mxu0 0
      %539 = vmatpush1.bf16.msra.mxu0 %v339
      %540 = vmatprep.subr.bf16.mxu0 0
      %541 = vmatpush1.bf16.msra.mxu0 %v340
      %542 = vmatprep.subr.bf16.mxu0 0
      %543 = vmatpush1.bf16.msra.mxu0 0
      %544 = vmatprep.subr.bf16.mxu0 0
      %545 = vmatpush1.bf16.msra.mxu0 0
      %546 = vmatprep.subr.bf16.mxu0 0
      %547 = vmatpush1.bf16.msra.mxu0 0
      %548 = vmatprep.subr.bf16.mxu0 0
      %549 = vmatpush1.bf16.msra.mxu0 0
      %550 = vmatprep.subr.bf16.mxu0 0
      %551 = vmatpush1.bf16.msra.mxu0 0
      %552 = vmatprep.subr.bf16.mxu0 0
      %553 = vmatpush1.bf16.msra.mxu0 0
      %554 = vmatprep.subr.bf16.mxu0 0
      %555 = vmatpush1.bf16.msra.mxu0 0
      %556 = vmatprep.subr.bf16.mxu0 0
      %557 = vmatpush1.bf16.msra.mxu0 0
      %558 = vmatprep.subr.bf16.mxu0 0
      %559 = vmatpush1.bf16.msra.mxu0 0
      %560 = vmatprep.subr.bf16.mxu0 0
      %561 = vmatpush1.bf16.msra.mxu0 0
      %562 = vmatprep.subr.bf16.mxu0 0
      %563 = vmatpush1.bf16.msra.mxu0 0
      %564 = vmatprep.subr.bf16.mxu0 0
      %565 = vmatpush1.bf16.msra.mxu0 0
      %566 = vmatprep.subr.bf16.mxu0 0
      %567 = vmatpush1.bf16.msra.mxu0 0
      %568 = vmatprep.subr.bf16.mxu0 0
      %569 = vmatpush1.bf16.msra.mxu0 0
      %570 = vmatprep.mubr.bf16.mxu0 0
      %571 = vmatmul.mubr.bf16.gmra.mrb[0].mxu0 %v536
      %v572 = vpop.f32.mrb[0].mxu0
      %v573 = vadd.f32 %v324, %v572
      %v574 = vpop.f32.mrb[0].mxu0
      %v575 = vpop.f32.mrb[0].mxu0
      %v576 = vadd.f32 %v324, %v575
      %v577 = vpop.f32.mrb[0].mxu0
      %578 = vdwg.mxu0
      %v579 = vpack.c.bf16 %v576, %v573
      %v581 = vsel %vm389, %v579, 0
      %583 = vmatprep.subr.bf16.mxu0 0
      %584 = vmatpush1.bf16.msra.mxu0 %v395
      %585 = vmatprep.subr.bf16.mxu0 0
      %586 = vmatpush1.bf16.msra.mxu0 0
      %587 = vmatprep.subr.bf16.mxu0 0
      %588 = vmatpush1.bf16.msra.mxu0 0
      %589 = vmatprep.subr.bf16.mxu0 0
      %590 = vmatpush1.bf16.msra.mxu0 0
      %591 = vmatprep.subr.bf16.mxu0 0
      %592 = vmatpush1.bf16.msra.mxu0 0
      %593 = vmatprep.subr.bf16.mxu0 0
      %594 = vmatpush1.bf16.msra.mxu0 0
      %595 = vmatprep.subr.bf16.mxu0 0
      %596 = vmatpush1.bf16.msra.mxu0 0
      %597 = vmatprep.subr.bf16.mxu0 0
      %598 = vmatpush1.bf16.msra.mxu0 0
      %599 = vmatprep.subr.bf16.mxu0 0
      %600 = vmatpush1.bf16.msra.mxu0 0
      %601 = vmatprep.subr.bf16.mxu0 0
      %602 = vmatpush1.bf16.msra.mxu0 0
      %603 = vmatprep.subr.bf16.mxu0 0
      %604 = vmatpush1.bf16.msra.mxu0 0
      %605 = vmatprep.subr.bf16.mxu0 0
      %606 = vmatpush1.bf16.msra.mxu0 0
      %607 = vmatprep.subr.bf16.mxu0 0
      %608 = vmatpush1.bf16.msra.mxu0 0
      %609 = vmatprep.subr.bf16.mxu0 0
      %610 = vmatpush1.bf16.msra.mxu0 0
      %611 = vmatprep.subr.bf16.mxu0 0
      %612 = vmatpush1.bf16.msra.mxu0 0
      %613 = vmatprep.subr.bf16.mxu0 0
      %614 = vmatpush1.bf16.msra.mxu0 0
      %615 = vmatprep.mubr.bf16.mxu0 0
      %616 = vmatmul.mubr.bf16.gmra.mrb[0].mxu0 %v581
      %v617 = vpop.f32.mrb[0].mxu0
      %v618 = vadd.f32 0.0, %v617
      %v619 = vpop.f32.mrb[0].mxu0
      %v620 = vpop.f32.mrb[0].mxu0
      %v621 = vadd.f32 0.0, %v620
      %v622 = vpop.f32.mrb[0].mxu0
      %623 = vdwg.mxu0
      %v624 = vadd.f32 %v531, %v573
      %v625 = vadd.f32 %v532, %v576
      %626 = vrot.lane.b32.xlu0 %v330, 32
      %v627 = vpop.permute.xlu0 %626
      %v629 = vsel %vm343, %v627, 0
      %631 = vmatprep.subr.bf16.mxu0 0
      %632 = vmatpush1.bf16.msra.mxu0 %v339
      %633 = vmatprep.subr.bf16.mxu0 0
      %634 = vmatpush1.bf16.msra.mxu0 %v340
      %635 = vmatprep.subr.bf16.mxu0 0
      %636 = vmatpush1.bf16.msra.mxu0 0
      %637 = vmatprep.subr.bf16.mxu0 0
      %638 = vmatpush1.bf16.msra.mxu0 0
      %639 = vmatprep.subr.bf16.mxu0 0
      %640 = vmatpush1.bf16.msra.mxu0 0
      %641 = vmatprep.subr.bf16.mxu0 0
      %642 = vmatpush1.bf16.msra.mxu0 0
      %643 = vmatprep.subr.bf16.mxu0 0
      %644 = vmatpush1.bf16.msra.mxu0 0
      %645 = vmatprep.subr.bf16.mxu0 0
      %646 = vmatpush1.bf16.msra.mxu0 0
      %647 = vmatprep.subr.bf16.mxu0 0
      %648 = vmatpush1.bf16.msra.mxu0 0
      %649 = vmatprep.subr.bf16.mxu0 0
      %650 = vmatpush1.bf16.msra.mxu0 0
      %651 = vmatprep.subr.bf16.mxu0 0
      %652 = vmatpush1.bf16.msra.mxu0 0
      %653 = vmatprep.subr.bf16.mxu0 0
      %654 = vmatpush1.bf16.msra.mxu0 0
      %655 = vmatprep.subr.bf16.mxu0 0
      %656 = vmatpush1.bf16.msra.mxu0 0
      %657 = vmatprep.subr.bf16.mxu0 0
      %658 = vmatpush1.bf16.msra.mxu0 0
      %659 = vmatprep.subr.bf16.mxu0 0
      %660 = vmatpush1.bf16.msra.mxu0 0
      %661 = vmatprep.subr.bf16.mxu0 0
      %662 = vmatpush1.bf16.msra.mxu0 0
      %663 = vmatprep.mubr.bf16.mxu0 0
      %664 = vmatmul.mubr.bf16.gmra.mrb[0].mxu0 %v629
      %v665 = vpop.f32.mrb[0].mxu0
      %v666 = vadd.f32 %v324, %v665
      %v667 = vpop.f32.mrb[0].mxu0
      %v668 = vpop.f32.mrb[0].mxu0
      %v669 = vadd.f32 %v324, %v668
      %v670 = vpop.f32.mrb[0].mxu0
      %671 = vdwg.mxu0
      %v672 = vpack.c.bf16 %v669, %v666
      %v674 = vsel %vm389, %v672, 0
      %676 = vmatprep.subr.bf16.mxu0 0
      %677 = vmatpush1.bf16.msra.mxu0 %v395
      %678 = vmatprep.subr.bf16.mxu0 0
      %679 = vmatpush1.bf16.msra.mxu0 0
      %680 = vmatprep.subr.bf16.mxu0 0
      %681 = vmatpush1.bf16.msra.mxu0 0
      %682 = vmatprep.subr.bf16.mxu0 0
      %683 = vmatpush1.bf16.msra.mxu0 0
      %684 = vmatprep.subr.bf16.mxu0 0
      %685 = vmatpush1.bf16.msra.mxu0 0
      %686 = vmatprep.subr.bf16.mxu0 0
      %687 = vmatpush1.bf16.msra.mxu0 0
      %688 = vmatprep.subr.bf16.mxu0 0
      %689 = vmatpush1.bf16.msra.mxu0 0
      %690 = vmatprep.subr.bf16.mxu0 0
      %691 = vmatpush1.bf16.msra.mxu0 0
      %692 = vmatprep.subr.bf16.mxu0 0
      %693 = vmatpush1.bf16.msra.mxu0 0
      %694 = vmatprep.subr.bf16.mxu0 0
      %695 = vmatpush1.bf16.msra.mxu0 0
      %696 = vmatprep.subr.bf16.mxu0 0
      %697 = vmatpush1.bf16.msra.mxu0 0
      %698 = vmatprep.subr.bf16.mxu0 0
      %699 = vmatpush1.bf16.msra.mxu0 0
      %700 = vmatprep.subr.bf16.mxu0 0
      %701 = vmatpush1.bf16.msra.mxu0 0
      %702 = vmatprep.subr.bf16.mxu0 0
      %703 = vmatpush1.bf16.msra.mxu0 0
      %704 = vmatprep.subr.bf16.mxu0 0
      %705 = vmatpush1.bf16.msra.mxu0 0
      %706 = vmatprep.subr.bf16.mxu0 0
      %707 = vmatpush1.bf16.msra.mxu0 0
      %708 = vmatprep.mubr.bf16.mxu0 0
      %709 = vmatmul.mubr.bf16.gmra.mrb[0].mxu0 %v674
      %v710 = vpop.f32.mrb[0].mxu0
      %v711 = vadd.f32 0.0, %v710
      %v712 = vpop.f32.mrb[0].mxu0
      %v713 = vpop.f32.mrb[0].mxu0
      %v714 = vadd.f32 0.0, %v713
      %v715 = vpop.f32.mrb[0].mxu0
      %716 = vdwg.mxu0
      %v717 = vadd.f32 %v624, %v666
      %v718 = vadd.f32 %v625, %v669
      %v719 = vpack.c.bf16 %v718, %v717
      %v720 = vld [vmem:[%s4] sm:$0xf]
      %v721 = vld [vmem:[%s5] sm:$0x1]
      %v723 = vlaneseq
      %v724 = vshrl.u32 %v723, 7
      %v725 = vsub.s32 0, %v724
      %v726 = vrot.slane %v721, %v725
      %v729 = vsel %vm389, %v719, 0
      %v732 = vsel %vm393, %v720, 0
      %734 = vmatprep.subr.bf16.mxu0 0
      %735 = vmatpush1.bf16.msra.mxu0 %v732
      %736 = vmatprep.subr.bf16.mxu0 0
      %737 = vmatpush1.bf16.msra.mxu0 0
      %738 = vmatprep.subr.bf16.mxu0 0
      %739 = vmatpush1.bf16.msra.mxu0 0
      %740 = vmatprep.subr.bf16.mxu0 0
      %741 = vmatpush1.bf16.msra.mxu0 0
      %742 = vmatprep.subr.bf16.mxu0 0
      %743 = vmatpush1.bf16.msra.mxu0 0
      %744 = vmatprep.subr.bf16.mxu0 0
      %745 = vmatpush1.bf16.msra.mxu0 0
      %746 = vmatprep.subr.bf16.mxu0 0
      %747 = vmatpush1.bf16.msra.mxu0 0
      %748 = vmatprep.subr.bf16.mxu0 0
      %749 = vmatpush1.bf16.msra.mxu0 0
      %750 = vmatprep.subr.bf16.mxu0 0
      %751 = vmatpush1.bf16.msra.mxu0 0
      %752 = vmatprep.subr.bf16.mxu0 0
      %753 = vmatpush1.bf16.msra.mxu0 0
      %754 = vmatprep.subr.bf16.mxu0 0
      %755 = vmatpush1.bf16.msra.mxu0 0
      %756 = vmatprep.subr.bf16.mxu0 0
      %757 = vmatpush1.bf16.msra.mxu0 0
      %758 = vmatprep.subr.bf16.mxu0 0
      %759 = vmatpush1.bf16.msra.mxu0 0
      %760 = vmatprep.subr.bf16.mxu0 0
      %761 = vmatpush1.bf16.msra.mxu0 0
      %762 = vmatprep.subr.bf16.mxu0 0
      %763 = vmatpush1.bf16.msra.mxu0 0
      %764 = vmatprep.subr.bf16.mxu0 0
      %765 = vmatpush1.bf16.msra.mxu0 0
      %766 = vmatprep.mubr.bf16.mxu0 0
      %767 = vmatmul.mubr.bf16.gmra.mrb[0].mxu0 %v729
      %v768 = vpop.f32.mrb[0].mxu0
      %v769 = vadd.f32 %v726, %v768
      %v770 = vpop.f32.mrb[0].mxu0
      %v771 = vpop.f32.mrb[0].mxu0
      %v772 = vadd.f32 %v726, %v771
      %v773 = vpop.f32.mrb[0].mxu0
      %774 = vdwg.mxu0
      %vm775 = vcmask 15360
      %v776 = vsel %vm775, %v769, -inf
      %777 = vmax.xlane.f32.xlu0 %v776
      %v778 = vpop.xlane.xlu0 %777
      %v779 = vsel %vm775, %v772, -inf
      %780 = vmax.xlane.f32.xlu0 %v779
      %v781 = vpop.xlane.xlu0 %780
      %v782 = vsub.f32 %v769, %v778
      %v783 = vsub.f32 %v772, %v781
      %v784 = vmul.f32 %v782, 1.442695
      %v785 = vpow.pop %v784
      %v786 = vmul.f32 %v783, 1.442695
      %v787 = vpow.pop %v786
      %v788 = vsel %vm775, %v785, 0.0
      %789 = vadd.xlane.f32.xlu0 %v788
      %v790 = vpop.xlane.xlu0 %789
      %v791 = vsel %vm775, %v787, 0.0
      %792 = vadd.xlane.f32.xlu0 %v791
      %v793 = vpop.xlane.xlu0 %792
      %v794 = vrcp.pop %v790
      %v795 = vrcp.pop %v793
      %v796 = vmul.f32 %v785, %v794
      %v797 = vmul.f32 %v787, %v795
      %v798 = vmax.f32 %v432, %v525
      %v799 = vmax.f32 %v435, %v528
      %v800 = vmax.f32 %v798, %v618
      %v801 = vmax.f32 %v799, %v621
      %v802 = vmax.f32 %v800, %v711
      %v803 = vmax.f32 %v801, %v714
      %v804 = vsub.f32 %v432, %v802
      %v805 = vsub.f32 %v435, %v803
      %v806 = vmul.f32 %v804, 1.442695
      %v807 = vpow.pop %v806
      %v808 = vmul.f32 %v805, 1.442695
      %v809 = vpow.pop %v808
      %v810 = vsub.f32 %v525, %v802
      %v811 = vsub.f32 %v528, %v803
      %v812 = vmul.f32 %v810, 1.442695
      %v813 = vpow.pop %v812
      %v814 = vmul.f32 %v811, 1.442695
      %v815 = vpow.pop %v814
      %v816 = vsub.f32 %v618, %v802
      %v817 = vsub.f32 %v621, %v803
      %v818 = vmul.f32 %v816, 1.442695
      %v819 = vpow.pop %v818
      %v820 = vmul.f32 %v817, 1.442695
      %v821 = vpow.pop %v820
      %v822 = vsub.f32 %v711, %v802
      %v823 = vsub.f32 %v714, %v803
      %v824 = vmul.f32 %v822, 1.442695
      %v825 = vpow.pop %v824
      %v826 = vmul.f32 %v823, 1.442695
      %v827 = vpow.pop %v826
      %v828 = vadd.f32 %v807, %v813
      %v829 = vadd.f32 %v809, %v815
      %v830 = vadd.f32 %v828, %v819
      %v831 = vadd.f32 %v829, %v821
      %v832 = vadd.f32 %v830, %v825
      %v833 = vadd.f32 %v831, %v827
      %v834 = vrcp.pop %v832
      %v835 = vrcp.pop %v833
      %v836 = vmul.f32 %v807, %v834
      %v837 = vmul.f32 %v809, %v835
      %839 = vset.pattern.permute.xlu0 0
      %840 = vperm.xlu0 %839, %v836
      %v841 = vpop.permute.xlu0 %840
      %844 = vset.pattern.permute.xlu0 0
      %845 = vperm.xlu0 %844, %v837
      %v846 = vpop.permute.xlu0 %845
      %v848 = vmul.f32 %v841, %v382
      %v849 = vmul.f32 %v846, %v385
      %v850 = vmul.f32 %v813, %v834
      %v851 = vmul.f32 %v815, %v835
      %853 = vset.pattern.permute.xlu0 0
      %854 = vperm.xlu0 %853, %v850
      %v855 = vpop.permute.xlu0 %854
      %858 = vset.pattern.permute.xlu0 0
      %859 = vperm.xlu0 %858, %v851
      %v860 = vpop.permute.xlu0 %859
      %v862 = vmul.f32 %v855, %v480
      %v863 = vmul.f32 %v860, %v483
      %v864 = vadd.f32 %v848, %v862
      %v865 = vadd.f32 %v849, %v863
      %v866 = vmul.f32 %v819, %v834
      %v867 = vmul.f32 %v821, %v835
      %869 = vset.pattern.permute.xlu0 0
      %870 = vperm.xlu0 %869, %v866
      %v871 = vpop.permute.xlu0 %870
      %874 = vset.pattern.permute.xlu0 0
      %875 = vperm.xlu0 %874, %v867
      %v876 = vpop.permute.xlu0 %875
      %v878 = vmul.f32 %v871, %v573
      %v879 = vmul.f32 %v876, %v576
      %v880 = vadd.f32 %v864, %v878
      %v881 = vadd.f32 %v865, %v879
      %v882 = vmul.f32 %v825, %v834
      %v883 = vmul.f32 %v827, %v835
      %885 = vset.pattern.permute.xlu0 0
      %886 = vperm.xlu0 %885, %v882
      %v887 = vpop.permute.xlu0 %886
      %890 = vset.pattern.permute.xlu0 0
      %891 = vperm.xlu0 %890, %v883
      %v892 = vpop.permute.xlu0 %891
      %v894 = vmul.f32 %v887, %v666
      %v895 = vmul.f32 %v892, %v669
      %v896 = vadd.f32 %v880, %v894
      %v897 = vadd.f32 %v881, %v895
      %v898 = vpack.c.bf16 %v897, %v896
      %v899 = vld [vmem:[%s6] sm:$0xf]
      %v900 = vld [vmem:[%s7] sm:$0x1]
      %v901 = vlaneseq
      %v902 = vshrl.u32 %v901, 7
      %v903 = vsub.s32 0, %v902
      %v904 = vrot.slane %v900, %v903
      %v906 = vsel %vm389, %v898, 0
      %v909 = vsel %vm393, %v899, 0
      %911 = vmatprep.subr.bf16.mxu0 0
      %912 = vmatpush1.bf16.msra.mxu0 %v909
      %913 = vmatprep.subr.bf16.mxu0 0
      %914 = vmatpush1.bf16.msra.mxu0 0
      %915 = vmatprep.subr.bf16.mxu0 0
      %916 = vmatpush1.bf16.msra.mxu0 0
      %917 = vmatprep.subr.bf16.mxu0 0
      %918 = vmatpush1.bf16.msra.mxu0 0
      %919 = vmatprep.subr.bf16.mxu0 0
      %920 = vmatpush1.bf16.msra.mxu0 0
      %921 = vmatprep.subr.bf16.mxu0 0
      %922 = vmatpush1.bf16.msra.mxu0 0
      %923 = vmatprep.subr.bf16.mxu0 0
      %924 = vmatpush1.bf16.msra.mxu0 0
      %925 = vmatprep.subr.bf16.mxu0 0
      %926 = vmatpush1.bf16.msra.mxu0 0
      %927 = vmatprep.subr.bf16.mxu0 0
      %928 = vmatpush1.bf16.msra.mxu0 0
      %929 = vmatprep.subr.bf16.mxu0 0
      %930 = vmatpush1.bf16.msra.mxu0 0
      %931 = vmatprep.subr.bf16.mxu0 0
      %932 = vmatpush1.bf16.msra.mxu0 0
      %933 = vmatprep.subr.bf16.mxu0 0
      %934 = vmatpush1.bf16.msra.mxu0 0
      %935 = vmatprep.subr.bf16.mxu0 0
      %936 = vmatpush1.bf16.msra.mxu0 0
      %937 = vmatprep.subr.bf16.mxu0 0
      %938 = vmatpush1.bf16.msra.mxu0 0
      %939 = vmatprep.subr.bf16.mxu0 0
      %940 = vmatpush1.bf16.msra.mxu0 0
      %941 = vmatprep.subr.bf16.mxu0 0
      %942 = vmatpush1.bf16.msra.mxu0 0
      %943 = vmatprep.mubr.bf16.mxu0 0
      %944 = vmatmul.mubr.bf16.gmra.mrb[0].mxu0 %v906
      %v945 = vpop.f32.mrb[0].mxu0
      %v946 = vadd.f32 %v904, %v945
      %v947 = vpop.f32.mrb[0].mxu0
      %v948 = vpop.f32.mrb[0].mxu0
      %v949 = vadd.f32 %v904, %v948
      %v950 = vpop.f32.mrb[0].mxu0
      %951 = vdwg.mxu0
      %953 = vset.pattern.permute.xlu0 0
      %954 = vperm.xlu0 %953, %v796
      %v955 = vpop.permute.xlu0 %954
      %958 = vset.pattern.permute.xlu0 0
      %959 = vperm.xlu0 %958, %v797
      %v960 = vpop.permute.xlu0 %959
      %v962 = vmul.f32 %v955, %v946
      %v963 = vmul.f32 %v960, %v949
      %v964 = vadd.f32 %v962, 0.0
      %v965 = vadd.f32 %v963, 0.0
      %966 = vset.pattern.permute.xlu0 1
      %967 = vperm.xlu0 %966, %v836
      %v968 = vpop.permute.xlu0 %967
      %970 = vset.pattern.permute.xlu0 1
      %971 = vperm.xlu0 %970, %v837
      %v972 = vpop.permute.xlu0 %971
      %v974 = vmul.f32 %v968, %v382
      %v975 = vmul.f32 %v972, %v385
      %976 = vset.pattern.permute.xlu0 1
      %977 = vperm.xlu0 %976, %v850
      %v978 = vpop.permute.xlu0 %977
      %980 = vset.pattern.permute.xlu0 1
      %981 = vperm.xlu0 %980, %v851
      %v982 = vpop.permute.xlu0 %981
      %v984 = vmul.f32 %v978, %v480
      %v985 = vmul.f32 %v982, %v483
      %v986 = vadd.f32 %v974, %v984
      %v987 = vadd.f32 %v975, %v985
      %988 = vset.pattern.permute.xlu0 1
      %989 = vperm.xlu0 %988, %v866
      %v990 = vpop.permute.xlu0 %989
      %992 = vset.pattern.permute.xlu0 1
      %993 = vperm.xlu0 %992, %v867
      %v994 = vpop.permute.xlu0 %993
      %v996 = vmul.f32 %v990, %v573
      %v997 = vmul.f32 %v994, %v576
      %v998 = vadd.f32 %v986, %v996
      %v999 = vadd.f32 %v987, %v997
      %1000 = vset.pattern.permute.xlu0 1
      %1001 = vperm.xlu0 %1000, %v882
      %v1002 = vpop.permute.xlu0 %1001
      %1004 = vset.pattern.permute.xlu0 1
      %1005 = vperm.xlu0 %1004, %v883
      %v1006 = vpop.permute.xlu0 %1005
      %v1008 = vmul.f32 %v1002, %v666
      %v1009 = vmul.f32 %v1006, %v669
      %v1010 = vadd.f32 %v998, %v1008
      %v1011 = vadd.f32 %v999, %v1009
      %v1012 = vpack.c.bf16 %v1011, %v1010
      %s1013 = scalar_lea.vmem %s6, 4
      %v1014 = vld [vmem:[%s1013] sm:$0xf]
      %v1015 = vld [vmem:[%s7 + $0x1] sm:$0x1]
      %v1016 = vlaneseq
      %v1017 = vshrl.u32 %v1016, 7
      %v1018 = vsub.s32 0, %v1017
      %v1019 = vrot.slane %v1015, %v1018
      %v1021 = vsel %vm389, %v1012, 0
      %v1024 = vsel %vm393, %v1014, 0
      %1026 = vmatprep.subr.bf16.mxu0 0
      %1027 = vmatpush1.bf16.msra.mxu0 %v1024
      %1028 = vmatprep.subr.bf16.mxu0 0
      %1029 = vmatpush1.bf16.msra.mxu0 0
      %1030 = vmatprep.subr.bf16.mxu0 0
      %1031 = vmatpush1.bf16.msra.mxu0 0
      %1032 = vmatprep.subr.bf16.mxu0 0
      %1033 = vmatpush1.bf16.msra.mxu0 0
      %1034 = vmatprep.subr.bf16.mxu0 0
      %1035 = vmatpush1.bf16.msra.mxu0 0
      %1036 = vmatprep.subr.bf16.mxu0 0
      %1037 = vmatpush1.bf16.msra.mxu0 0
      %1038 = vmatprep.subr.bf16.mxu0 0
      %1039 = vmatpush1.bf16.msra.mxu0 0
      %1040 = vmatprep.subr.bf16.mxu0 0
      %1041 = vmatpush1.bf16.msra.mxu0 0
      %1042 = vmatprep.subr.bf16.mxu0 0
      %1043 = vmatpush1.bf16.msra.mxu0 0
      %1044 = vmatprep.subr.bf16.mxu0 0
      %1045 = vmatpush1.bf16.msra.mxu0 0
      %1046 = vmatprep.subr.bf16.mxu0 0
      %1047 = vmatpush1.bf16.msra.mxu0 0
      %1048 = vmatprep.subr.bf16.mxu0 0
      %1049 = vmatpush1.bf16.msra.mxu0 0
      %1050 = vmatprep.subr.bf16.mxu0 0
      %1051 = vmatpush1.bf16.msra.mxu0 0
      %1052 = vmatprep.subr.bf16.mxu0 0
      %1053 = vmatpush1.bf16.msra.mxu0 0
      %1054 = vmatprep.subr.bf16.mxu0 0
      %1055 = vmatpush1.bf16.msra.mxu0 0
      %1056 = vmatprep.subr.bf16.mxu0 0
      %1057 = vmatpush1.bf16.msra.mxu0 0
      %1058 = vmatprep.mubr.bf16.mxu0 0
      %1059 = vmatmul.mubr.bf16.gmra.mrb[0].mxu0 %v1021
      %v1060 = vpop.f32.mrb[0].mxu0
      %v1061 = vadd.f32 %v1019, %v1060
      %v1062 = vpop.f32.mrb[0].mxu0
      %v1063 = vpop.f32.mrb[0].mxu0
      %v1064 = vadd.f32 %v1019, %v1063
      %v1065 = vpop.f32.mrb[0].mxu0
      %1066 = vdwg.mxu0
      %1067 = vset.pattern.permute.xlu0 1
      %1068 = vperm.xlu0 %1067, %v796
      %v1069 = vpop.permute.xlu0 %1068
      %1071 = vset.pattern.permute.xlu0 1
      %1072 = vperm.xlu0 %1071, %v797
      %v1073 = vpop.permute.xlu0 %1072
      %v1075 = vmul.f32 %v1069, %v1061
      %v1076 = vmul.f32 %v1073, %v1064
      %v1077 = vadd.f32 %v964, %v1075
      %v1078 = vadd.f32 %v965, %v1076
      %v1079 = vxor.u32 %v1077, 2147483648
      %v1080 = vxor.u32 %v1078, 2147483648
      %v1081 = vmul.f32 %v1079, 1.442695
      %v1082 = vpow.pop %v1081
      %v1083 = vmul.f32 %v1080, 1.442695
      %v1084 = vpow.pop %v1083
      %v1085 = vadd.f32 %v1082, 1.0
      %v1086 = vadd.f32 %v1084, 1.0
      %v1087 = vrcp.pop %v1085
      %v1088 = vmul.f32 1.0, %v1087
      %v1089 = vrcp.pop %v1086
      %v1090 = vmul.f32 1.0, %v1089
      %1091 = vst.msk [vmem:[%s307] sm:$0xff] %vm389, %v1088
      %1092 = vst.msk [vmem:[%s307 + $0x8] sm:$0xff] %vm389, %v1090
      %s1093 = smul.u32 2, %s19
      %p1094 = scmp.lt.s32.totalorder %s1093, 3
      %s1095 = scalar_select %p1094, %s1093, 3
      %s1096 = smul.addr %s1095, 8
      %s1097 = scalar_lea.vmem %s8, %s1096
      // Predicated region
      $region53: #{tpu_custom_call.1} parent=51 // pred_check
        %p1098 = pneg %p210
      $region54: #{tpu_custom_call.1} parent=51 // pred_check_branch
        %1100 = sbr.rel (%p1098) target = $region56
      $region55: #{tpu_custom_call.1} parent=51 // pred_region
        %s1101 = smul.u32 2, %s19
      $region56: #{tpu_custom_call.1} parent=51 // pred_fallthru
        _
    $region52: #{tpu_custom_call.1} parent=5 // pred_fallthru
      _
    %p1102 = scmp.le.s32.totalorder 2, %s14
    // Predicated region
    $region57: #{tpu_custom_call.1} parent=5 // pred_check
      %p1103 = pneg %p1102
    $region58: #{tpu_custom_call.1} parent=5 // pred_check_branch
      %1105 = sbr.rel (%p1103) target = $region60
    $region59: #{tpu_custom_call.1} parent=5 // pred_region
      %s1106 = ssub.s32 %s14, 2
      // Predicated region
      $region61: #{tpu_custom_call.1} parent=59 // pred_check
        %p1107 = pneg %p216
      $region62: #{tpu_custom_call.1} parent=59 // pred_check_branch
        %1109 = sbr.rel (%p1107) target = $region64
      $region63: #{tpu_custom_call.1} parent=59 // pred_region
        %s1110 = smul.u32 2, %s20
        %p1111 = scmp.lt.s32.totalorder %s1110, 3
        %s1112 = scalar_select %p1111, %s1110, 3
        %s1113 = smul.addr %s1112, 8
        %s1114 = scalar_lea.vmem %s8, %s1113
      $region64: #{tpu_custom_call.1} parent=59 // pred_fallthru
        _
    $region60: #{tpu_custom_call.1} parent=5 // pred_fallthru
      _
  $region6: #{tpu_custom_call.1} parent=0 // loop_footer
    %s18 = sadd.s32 1, %s14
  $region7: #{tpu_custom_call.1} parent=0 // loop_footer_branch
    %13 = sbr.rel target = $region3
  $region8: #{tpu_custom_call.1} parent=0 // loop_exit
    _

</llo_original>
